<compile_context>
chip_gen: v7x
topology: tpu7x:2x2x1
jax: 0.10.0
libtpu: 0.0.40
codegen_flags: <defaults>
</compile_context>

<pallas_src>
import jax
import jax.numpy as jnp
import numpy as np
from jax.experimental import pallas as pl
from jax.experimental.pallas import tpu as pltpu

# ---------------- config (mirrors LSTM_Base_Net's config object) ----------------
BATCH = 2
HISTORY_TIMES = 8      # seq len T == in_features of linear_2
INPUT_SIZE = 4
HIDDEN_SIZE = 32
OUTPUT_SIZE = 4
LSTM_LAYERS = 1
# TODO(synk): multi-layer / bidirectional LSTM, inter-layer dropout, and a
#             user-supplied initial hidden state are not implemented (config:
#             lstm_layers=1, use_bidirectional=False, hidden=None -> zeros).


# ------------------------------ fused forward kernel ------------------------------
def _fused_kernel(x_ref, wih_ref, whh_ref, b_ref, weff_ref, beff_ref,
                  out_ref, hn_ref, cn_ref):
    # x_ref:    (T*B, I)  time-major flattened input
    # wih_ref:  (I, 4H)   W_ih^T
    # whh_ref:  (H, 4H)   W_hh^T
    # b_ref:    (1, 4H)   b_ih + b_hh
    # weff_ref: (T, H, O*O) combined linear_1/.view/linear_2 weight
    # beff_ref: (1, O*O)    combined bias
    T, H, OO = weff_ref.shape
    B = hn_ref.shape[0]

    # ---- hoisted input projection: ONE matmul, kept as values (no scratch). ----
    gx = (jnp.dot(x_ref[...], wih_ref[...], preferred_element_type=jnp.float32)
          + b_ref[...])                                   # (T*B, 4H)
    # time-major layout -> each per-step (B, 4H) slab is a contiguous sublane slice;
    # pre-sliced here, off the recurrence critical path.
    gx_slabs = [gx[t * B:(t + 1) * B, :] for t in range(T)]

    whh = whh_ref[...]                                    # (H, 4H), VMEM-resident

    # ---- LSTM recurrence: only h @ W_hh^T per step on the sequential path;
    #      h / c carried as values, loop statically unrolled (T = 8). ----
    h = jnp.zeros((B, H), jnp.float32)
    c = jnp.zeros((B, H), jnp.float32)
    out_acc = jnp.zeros((B, OO), jnp.float32)             # fused linear_1/view/linear_2 acc
    for t in range(T):
        gates = gx_slabs[t] + jnp.dot(h, whh, preferred_element_type=jnp.float32)
        # one sigmoid + one tanh over the full (B, 4H) slab (single vreg each),
        # then lane-slice: 2 EUP pushes instead of 4 per step.
        sig_all = jax.nn.sigmoid(gates)
        tanh_all = jnp.tanh(gates)
        i_g = sig_all[:, 0 * H:1 * H]
        f_g = sig_all[:, 1 * H:2 * H]
        g_g = tanh_all[:, 2 * H:3 * H]
        o_g = sig_all[:, 3 * H:4 * H]
        c = f_g * c + i_g * g_g
        h = o_g * jnp.tanh(c)
        # fused output projection: independent of the recurrence chain, freely schedulable
        out_acc = out_acc + jnp.dot(h, weff_ref[t],
                                    preferred_element_type=jnp.float32)

    # single dense stores
    out_ref[...] = out_acc + beff_ref[...]                # (B, O*O)
    hn_ref[...] = h
    cn_ref[...] = c


# ------------------------------- full forward pass -------------------------------
def lstm_base_net_forward(params, x):
    """x: (B, T, I) batch_first, like the PyTorch module."""
    B, T, I = x.shape
    H = HIDDEN_SIZE
    O = OUTPUT_SIZE
    assert T % O == 0, "fused .view(B,O,T) decomposition requires history_times % output_size == 0"
    # TODO(synk): if T % O != 0, fall back to a separate reshape between two kernels.
    G = T // O

    # time-major flatten so each per-step (B, 4H) gate slab is contiguous in sublanes
    x_tb = jnp.transpose(x, (1, 0, 2)).reshape(T * B, I)

    # ---- fold linear_1 + torch .view(B, O, T) + linear_2 into one weight/bias ----
    # out[b, o, j] = b2[j] + sum_t b1[t%O]*w2^T[t, j]
    #              + sum_t h_t[b] @ (w1^T @ w2^T[(t%G)*O:(t%G+1)*O, :])  placed at o = t//G
    w1_t, b1, w2_t, b2 = params["w1_t"], params["b1"], params["w2_t"], params["b2"]
    weff = jnp.zeros((T, H, O * O), jnp.float32)
    for t in range(T):
        o_blk, q = t // G, t % G
        wc = w1_t @ w2_t[q * O:(q + 1) * O, :]            # (H, O)
        weff = weff.at[t, :, o_blk * O:(o_blk + 1) * O].set(wc)
    beff = b2[0] + jnp.tile(b1[0], G) @ w2_t              # (O,), same for every o-block
    beff = jnp.tile(beff, O)[None, :]                     # (1, O*O)

    vmem = lambda: pl.BlockSpec(memory_space=pltpu.MemorySpace.VMEM)
    out_flat, h_n, c_n = pl.pallas_call(
        _fused_kernel,
        out_shape=(
            jax.ShapeDtypeStruct((B, O * O), jnp.float32),  # flat linear_out
            jax.ShapeDtypeStruct((B, H), jnp.float32),      # h_n
            jax.ShapeDtypeStruct((B, H), jnp.float32),      # c_n
        ),
        in_specs=[vmem() for _ in range(6)],
        out_specs=(vmem(), vmem(), vmem()),
    )(x_tb, params["wih_t"], params["whh_t"], params["b"], weff, beff)

    out = out_flat.reshape(B, O, O)                       # free row-major reshape
    return out, (h_n[None], c_n[None])                    # hidden: (1, B, H) each


# ------------------------------ pure-JAX reference --------------------------------
def reference_forward(params, x):
    B, T, _ = x.shape
    H = HIDDEN_SIZE
    h = jnp.zeros((B, H), jnp.float32)
    c = jnp.zeros((B, H), jnp.float32)
    outs = []
    for t in range(T):
        gates = x[:, t] @ params["wih_t"] + h @ params["whh_t"] + params["b"][0]
        i_g = jax.nn.sigmoid(gates[:, :H])
        f_g = jax.nn.sigmoid(gates[:, H:2 * H])
        g_g = jnp.tanh(gates[:, 2 * H:3 * H])
        o_g = jax.nn.sigmoid(gates[:, 3 * H:])
        c = f_g * c + i_g * g_g
        h = o_g * jnp.tanh(c)
        outs.append(h)
    lstm_out = jnp.stack(outs, axis=1)
    l1 = lstm_out @ params["w1_t"] + params["b1"][0]
    l1v = l1.reshape(B, l1.shape[2], l1.shape[1])            # torch .view(B, O, T)
    out = l1v @ params["w2_t"] + params["b2"][0]
    return out, (h[None], c[None])


# -------------------------- deterministic parameter init --------------------------
def init_params(key):
    keys = jax.random.split(key, 8)
    k = 1.0 / np.sqrt(HIDDEN_SIZE)
    wih = jax.random.uniform(keys[0], (4 * HIDDEN_SIZE, INPUT_SIZE), minval=-k, maxval=k)
    whh = jax.random.uniform(keys[1], (4 * HIDDEN_SIZE, HIDDEN_SIZE), minval=-k, maxval=k)
    bih = jax.random.uniform(keys[2], (4 * HIDDEN_SIZE,), minval=-k, maxval=k)
    bhh = jax.random.uniform(keys[3], (4 * HIDDEN_SIZE,), minval=-k, maxval=k)
    k1 = 1.0 / np.sqrt(HIDDEN_SIZE)
    w1 = jax.random.uniform(keys[4], (OUTPUT_SIZE, HIDDEN_SIZE), minval=-k1, maxval=k1)
    b1 = jax.random.uniform(keys[5], (OUTPUT_SIZE,), minval=-k1, maxval=k1)
    k2 = 1.0 / np.sqrt(HISTORY_TIMES)
    w2 = jax.random.uniform(keys[6], (OUTPUT_SIZE, HISTORY_TIMES), minval=-k2, maxval=k2)
    b2 = jax.random.uniform(keys[7], (OUTPUT_SIZE,), minval=-k2, maxval=k2)
    return {
        "wih_t": wih.T,                     # (I, 4H)
        "whh_t": whh.T,                     # (H, 4H)
        "b": (bih + bhh)[None, :],          # (1, 4H)
        "w1_t": w1.T, "b1": b1[None, :],    # (H, O), (1, O)
        "w2_t": w2.T, "b2": b2[None, :],    # (T, O), (1, O)
    }


if __name__ == "__main__":
    key = jax.random.PRNGKey(0)
    pkey, xkey = jax.random.split(key)
    params = init_params(pkey)
    x = jax.random.normal(xkey, (BATCH, HISTORY_TIMES, INPUT_SIZE), dtype=jnp.float32)

    fwd = jax.jit(lstm_base_net_forward)
    out, (h_n, c_n) = fwd(params, x)
    jax.block_until_ready((out, h_n, c_n))

    ref_out, (ref_h, ref_c) = reference_forward(params, x)
    np.testing.assert_allclose(np.asarray(out), np.asarray(ref_out), rtol=1e-5, atol=1e-5)
    np.testing.assert_allclose(np.asarray(h_n), np.asarray(ref_h), rtol=1e-5, atol=1e-5)
    np.testing.assert_allclose(np.asarray(c_n), np.asarray(ref_c), rtol=1e-5, atol=1e-5)
    assert out.shape == (BATCH, OUTPUT_SIZE, OUTPUT_SIZE)
    assert h_n.shape == (1, BATCH, HIDDEN_SIZE) and c_n.shape == (1, BATCH, HIDDEN_SIZE)

    print("KERNEL_OK")
</pallas_src>

<mosaic_0001>
module attributes {stable_mosaic.version = 11 : i64} {
  func.func @_fused_kernel(%arg0: memref<16x4xf32, #tpu.memory_space<vmem>>, %arg1: memref<4x128xf32, #tpu.memory_space<vmem>>, %arg2: memref<32x128xf32, #tpu.memory_space<vmem>>, %arg3: memref<1x128xf32, #tpu.memory_space<vmem>>, %arg4: memref<8x32x16xf32, #tpu.memory_space<vmem>>, %arg5: memref<1x16xf32, #tpu.memory_space<vmem>>, %arg6: memref<2x16xf32, #tpu.memory_space<vmem>>, %arg7: memref<2x32xf32, #tpu.memory_space<vmem>>, %arg8: memref<2x32xf32, #tpu.memory_space<vmem>>) attributes {dimension_semantics = [], scalar_prefetch = 0 : i64, scratch_operands = 0 : i64, tpu.core_type = #tpu.core_type<tc>} {
    %c0 = arith.constant 0 : index
    %c0_0 = arith.constant 0 : index
    %0 = vector.load %arg0[%c0, %c0_0] : memref<16x4xf32, #tpu.memory_space<vmem>>, vector<16x4xf32>
    %c0_1 = arith.constant 0 : index
    %c0_2 = arith.constant 0 : index
    %1 = vector.load %arg1[%c0_1, %c0_2] : memref<4x128xf32, #tpu.memory_space<vmem>>, vector<4x128xf32>
    %cst = arith.constant dense<0.000000e+00> : vector<16x128xf32>
    %2 = tpu.matmul %0, %1, %cst {dimension_numbers = #tpu.dot_dimension_numbers<[1], [0], [0], [1], [0, 0, 1, 1], [], []>} : vector<16x4xf32>, vector<4x128xf32>, vector<16x128xf32> -> vector<16x128xf32>
    %c0_3 = arith.constant 0 : index
    %c0_4 = arith.constant 0 : index
    %3 = vector.load %arg3[%c0_3, %c0_4] : memref<1x128xf32, #tpu.memory_space<vmem>>, vector<1x128xf32>
    %4 = vector.broadcast %3 : vector<1x128xf32> to vector<16x128xf32>
    %5 = arith.addf %2, %4 : vector<16x128xf32>
    %6 = vector.extract_strided_slice %5 {offsets = [0, 0], sizes = [2, 128], strides = [1, 1]} : vector<16x128xf32> to vector<2x128xf32>
    %7 = vector.extract_strided_slice %5 {offsets = [2, 0], sizes = [2, 128], strides = [1, 1]} : vector<16x128xf32> to vector<2x128xf32>
    %8 = vector.extract_strided_slice %5 {offsets = [4, 0], sizes = [2, 128], strides = [1, 1]} : vector<16x128xf32> to vector<2x128xf32>
    %9 = vector.extract_strided_slice %5 {offsets = [6, 0], sizes = [2, 128], strides = [1, 1]} : vector<16x128xf32> to vector<2x128xf32>
    %10 = vector.extract_strided_slice %5 {offsets = [8, 0], sizes = [2, 128], strides = [1, 1]} : vector<16x128xf32> to vector<2x128xf32>
    %11 = vector.extract_strided_slice %5 {offsets = [10, 0], sizes = [2, 128], strides = [1, 1]} : vector<16x128xf32> to vector<2x128xf32>
    %12 = vector.extract_strided_slice %5 {offsets = [12, 0], sizes = [2, 128], strides = [1, 1]} : vector<16x128xf32> to vector<2x128xf32>
    %13 = vector.extract_strided_slice %5 {offsets = [14, 0], sizes = [2, 128], strides = [1, 1]} : vector<16x128xf32> to vector<2x128xf32>
    %c0_5 = arith.constant 0 : index
    %c0_6 = arith.constant 0 : index
    %14 = vector.load %arg2[%c0_5, %c0_6] : memref<32x128xf32, #tpu.memory_space<vmem>>, vector<32x128xf32>
    %cst_7 = arith.constant 0.000000e+00 : f32
    %15 = vector.broadcast %cst_7 : f32 to vector<2x32xf32>
    %cst_8 = arith.constant 0.000000e+00 : f32
    %16 = vector.broadcast %cst_8 : f32 to vector<2x32xf32>
    %cst_9 = arith.constant 0.000000e+00 : f32
    %17 = vector.broadcast %cst_9 : f32 to vector<2x16xf32>
    %cst_10 = arith.constant dense<0.000000e+00> : vector<2x128xf32>
    %18 = tpu.matmul %15, %14, %cst_10 {dimension_numbers = #tpu.dot_dimension_numbers<[1], [0], [0], [1], [0, 0, 1, 1], [], []>} : vector<2x32xf32>, vector<32x128xf32>, vector<2x128xf32> -> vector<2x128xf32>
    %19 = arith.addf %6, %18 : vector<2x128xf32>
    %20 = arith.negf %19 : vector<2x128xf32>
    %21 = math.exp %20 : vector<2x128xf32>
    %cst_11 = arith.constant 1.000000e+00 : f32
    %22 = vector.broadcast %cst_11 : f32 to vector<2x128xf32>
    %23 = arith.addf %22, %21 : vector<2x128xf32>
    %24 = arith.divf %22, %23 : vector<2x128xf32>
    %25 = math.tanh %19 : vector<2x128xf32>
    %26 = vector.extract_strided_slice %24 {offsets = [0, 0], sizes = [2, 32], strides = [1, 1]} : vector<2x128xf32> to vector<2x32xf32>
    %27 = vector.extract_strided_slice %24 {offsets = [0, 32], sizes = [2, 32], strides = [1, 1]} : vector<2x128xf32> to vector<2x32xf32>
    %28 = vector.extract_strided_slice %25 {offsets = [0, 64], sizes = [2, 32], strides = [1, 1]} : vector<2x128xf32> to vector<2x32xf32>
    %29 = vector.extract_strided_slice %24 {offsets = [0, 96], sizes = [2, 32], strides = [1, 1]} : vector<2x128xf32> to vector<2x32xf32>
    %30 = arith.mulf %27, %16 : vector<2x32xf32>
    %31 = arith.mulf %26, %28 : vector<2x32xf32>
    %32 = arith.addf %30, %31 : vector<2x32xf32>
    %33 = math.tanh %32 : vector<2x32xf32>
    %34 = arith.mulf %29, %33 : vector<2x32xf32>
    %c0_12 = arith.constant 0 : index
    %c0_13 = arith.constant 0 : index
    %c0_14 = arith.constant 0 : index
    %35 = vector.load %arg4[%c0_12, %c0_13, %c0_14] : memref<8x32x16xf32, #tpu.memory_space<vmem>>, vector<1x32x16xf32>
    %36 = vector.shape_cast %35 : vector<1x32x16xf32> to vector<32x16xf32>
    %cst_15 = arith.constant dense<0.000000e+00> : vector<2x16xf32>
    %37 = tpu.matmul %34, %36, %cst_15 {dimension_numbers = #tpu.dot_dimension_numbers<[1], [0], [0], [1], [0, 0, 1, 1], [], []>} : vector<2x32xf32>, vector<32x16xf32>, vector<2x16xf32> -> vector<2x16xf32>
    %38 = arith.addf %17, %37 : vector<2x16xf32>
    %cst_16 = arith.constant dense<0.000000e+00> : vector<2x128xf32>
    %39 = tpu.matmul %34, %14, %cst_16 {dimension_numbers = #tpu.dot_dimension_numbers<[1], [0], [0], [1], [0, 0, 1, 1], [], []>} : vector<2x32xf32>, vector<32x128xf32>, vector<2x128xf32> -> vector<2x128xf32>
    %40 = arith.addf %7, %39 : vector<2x128xf32>
    %41 = arith.negf %40 : vector<2x128xf32>
    %42 = math.exp %41 : vector<2x128xf32>
    %cst_17 = arith.constant 1.000000e+00 : f32
    %43 = vector.broadcast %cst_17 : f32 to vector<2x128xf32>
    %44 = arith.addf %43, %42 : vector<2x128xf32>
    %45 = arith.divf %43, %44 : vector<2x128xf32>
    %46 = math.tanh %40 : vector<2x128xf32>
    %47 = vector.extract_strided_slice %45 {offsets = [0, 0], sizes = [2, 32], strides = [1, 1]} : vector<2x128xf32> to vector<2x32xf32>
    %48 = vector.extract_strided_slice %45 {offsets = [0, 32], sizes = [2, 32], strides = [1, 1]} : vector<2x128xf32> to vector<2x32xf32>
    %49 = vector.extract_strided_slice %46 {offsets = [0, 64], sizes = [2, 32], strides = [1, 1]} : vector<2x128xf32> to vector<2x32xf32>
    %50 = vector.extract_strided_slice %45 {offsets = [0, 96], sizes = [2, 32], strides = [1, 1]} : vector<2x128xf32> to vector<2x32xf32>
    %51 = arith.mulf %48, %32 : vector<2x32xf32>
    %52 = arith.mulf %47, %49 : vector<2x32xf32>
    %53 = arith.addf %51, %52 : vector<2x32xf32>
    %54 = math.tanh %53 : vector<2x32xf32>
    %55 = arith.mulf %50, %54 : vector<2x32xf32>
    %c1 = arith.constant 1 : index
    %c0_18 = arith.constant 0 : index
    %c0_19 = arith.constant 0 : index
    %56 = vector.load %arg4[%c1, %c0_18, %c0_19] : memref<8x32x16xf32, #tpu.memory_space<vmem>>, vector<1x32x16xf32>
    %57 = vector.shape_cast %56 : vector<1x32x16xf32> to vector<32x16xf32>
    %cst_20 = arith.constant dense<0.000000e+00> : vector<2x16xf32>
    %58 = tpu.matmul %55, %57, %cst_20 {dimension_numbers = #tpu.dot_dimension_numbers<[1], [0], [0], [1], [0, 0, 1, 1], [], []>} : vector<2x32xf32>, vector<32x16xf32>, vector<2x16xf32> -> vector<2x16xf32>
    %59 = arith.addf %38, %58 : vector<2x16xf32>
    %cst_21 = arith.constant dense<0.000000e+00> : vector<2x128xf32>
    %60 = tpu.matmul %55, %14, %cst_21 {dimension_numbers = #tpu.dot_dimension_numbers<[1], [0], [0], [1], [0, 0, 1, 1], [], []>} : vector<2x32xf32>, vector<32x128xf32>, vector<2x128xf32> -> vector<2x128xf32>
    %61 = arith.addf %8, %60 : vector<2x128xf32>
    %62 = arith.negf %61 : vector<2x128xf32>
    %63 = math.exp %62 : vector<2x128xf32>
    %cst_22 = arith.constant 1.000000e+00 : f32
    %64 = vector.broadcast %cst_22 : f32 to vector<2x128xf32>
    %65 = arith.addf %64, %63 : vector<2x128xf32>
    %66 = arith.divf %64, %65 : vector<2x128xf32>
    %67 = math.tanh %61 : vector<2x128xf32>
    %68 = vector.extract_strided_slice %66 {offsets = [0, 0], sizes = [2, 32], strides = [1, 1]} : vector<2x128xf32> to vector<2x32xf32>
    %69 = vector.extract_strided_slice %66 {offsets = [0, 32], sizes = [2, 32], strides = [1, 1]} : vector<2x128xf32> to vector<2x32xf32>
    %70 = vector.extract_strided_slice %67 {offsets = [0, 64], sizes = [2, 32], strides = [1, 1]} : vector<2x128xf32> to vector<2x32xf32>
    %71 = vector.extract_strided_slice %66 {offsets = [0, 96], sizes = [2, 32], strides = [1, 1]} : vector<2x128xf32> to vector<2x32xf32>
    %72 = arith.mulf %69, %53 : vector<2x32xf32>
    %73 = arith.mulf %68, %70 : vector<2x32xf32>
    %74 = arith.addf %72, %73 : vector<2x32xf32>
    %75 = math.tanh %74 : vector<2x32xf32>
    %76 = arith.mulf %71, %75 : vector<2x32xf32>
    %c2 = arith.constant 2 : index
    %c0_23 = arith.constant 0 : index
    %c0_24 = arith.constant 0 : index
    %77 = vector.load %arg4[%c2, %c0_23, %c0_24] : memref<8x32x16xf32, #tpu.memory_space<vmem>>, vector<1x32x16xf32>
    %78 = vector.shape_cast %77 : vector<1x32x16xf32> to vector<32x16xf32>
    %cst_25 = arith.constant dense<0.000000e+00> : vector<2x16xf32>
    %79 = tpu.matmul %76, %78, %cst_25 {dimension_numbers = #tpu.dot_dimension_numbers<[1], [0], [0], [1], [0, 0, 1, 1], [], []>} : vector<2x32xf32>, vector<32x16xf32>, vector<2x16xf32> -> vector<2x16xf32>
    %80 = arith.addf %59, %79 : vector<2x16xf32>
    %cst_26 = arith.constant dense<0.000000e+00> : vector<2x128xf32>
    %81 = tpu.matmul %76, %14, %cst_26 {dimension_numbers = #tpu.dot_dimension_numbers<[1], [0], [0], [1], [0, 0, 1, 1], [], []>} : vector<2x32xf32>, vector<32x128xf32>, vector<2x128xf32> -> vector<2x128xf32>
    %82 = arith.addf %9, %81 : vector<2x128xf32>
    %83 = arith.negf %82 : vector<2x128xf32>
    %84 = math.exp %83 : vector<2x128xf32>
    %cst_27 = arith.constant 1.000000e+00 : f32
    %85 = vector.broadcast %cst_27 : f32 to vector<2x128xf32>
    %86 = arith.addf %85, %84 : vector<2x128xf32>
    %87 = arith.divf %85, %86 : vector<2x128xf32>
    %88 = math.tanh %82 : vector<2x128xf32>
    %89 = vector.extract_strided_slice %87 {offsets = [0, 0], sizes = [2, 32], strides = [1, 1]} : vector<2x128xf32> to vector<2x32xf32>
    %90 = vector.extract_strided_slice %87 {offsets = [0, 32], sizes = [2, 32], strides = [1, 1]} : vector<2x128xf32> to vector<2x32xf32>
    %91 = vector.extract_strided_slice %88 {offsets = [0, 64], sizes = [2, 32], strides = [1, 1]} : vector<2x128xf32> to vector<2x32xf32>
    %92 = vector.extract_strided_slice %87 {offsets = [0, 96], sizes = [2, 32], strides = [1, 1]} : vector<2x128xf32> to vector<2x32xf32>
    %93 = arith.mulf %90, %74 : vector<2x32xf32>
    %94 = arith.mulf %89, %91 : vector<2x32xf32>
    %95 = arith.addf %93, %94 : vector<2x32xf32>
    %96 = math.tanh %95 : vector<2x32xf32>
    %97 = arith.mulf %92, %96 : vector<2x32xf32>
    %c3 = arith.constant 3 : index
    %c0_28 = arith.constant 0 : index
    %c0_29 = arith.constant 0 : index
    %98 = vector.load %arg4[%c3, %c0_28, %c0_29] : memref<8x32x16xf32, #tpu.memory_space<vmem>>, vector<1x32x16xf32>
    %99 = vector.shape_cast %98 : vector<1x32x16xf32> to vector<32x16xf32>
    %cst_30 = arith.constant dense<0.000000e+00> : vector<2x16xf32>
    %100 = tpu.matmul %97, %99, %cst_30 {dimension_numbers = #tpu.dot_dimension_numbers<[1], [0], [0], [1], [0, 0, 1, 1], [], []>} : vector<2x32xf32>, vector<32x16xf32>, vector<2x16xf32> -> vector<2x16xf32>
    %101 = arith.addf %80, %100 : vector<2x16xf32>
    %cst_31 = arith.constant dense<0.000000e+00> : vector<2x128xf32>
    %102 = tpu.matmul %97, %14, %cst_31 {dimension_numbers = #tpu.dot_dimension_numbers<[1], [0], [0], [1], [0, 0, 1, 1], [], []>} : vector<2x32xf32>, vector<32x128xf32>, vector<2x128xf32> -> vector<2x128xf32>
    %103 = arith.addf %10, %102 : vector<2x128xf32>
    %104 = arith.negf %103 : vector<2x128xf32>
    %105 = math.exp %104 : vector<2x128xf32>
    %cst_32 = arith.constant 1.000000e+00 : f32
    %106 = vector.broadcast %cst_32 : f32 to vector<2x128xf32>
    %107 = arith.addf %106, %105 : vector<2x128xf32>
    %108 = arith.divf %106, %107 : vector<2x128xf32>
    %109 = math.tanh %103 : vector<2x128xf32>
    %110 = vector.extract_strided_slice %108 {offsets = [0, 0], sizes = [2, 32], strides = [1, 1]} : vector<2x128xf32> to vector<2x32xf32>
    %111 = vector.extract_strided_slice %108 {offsets = [0, 32], sizes = [2, 32], strides = [1, 1]} : vector<2x128xf32> to vector<2x32xf32>
    %112 = vector.extract_strided_slice %109 {offsets = [0, 64], sizes = [2, 32], strides = [1, 1]} : vector<2x128xf32> to vector<2x32xf32>
    %113 = vector.extract_strided_slice %108 {offsets = [0, 96], sizes = [2, 32], strides = [1, 1]} : vector<2x128xf32> to vector<2x32xf32>
    %114 = arith.mulf %111, %95 : vector<2x32xf32>
    %115 = arith.mulf %110, %112 : vector<2x32xf32>
    %116 = arith.addf %114, %115 : vector<2x32xf32>
    %117 = math.tanh %116 : vector<2x32xf32>
    %118 = arith.mulf %113, %117 : vector<2x32xf32>
    %c4 = arith.constant 4 : index
    %c0_33 = arith.constant 0 : index
    %c0_34 = arith.constant 0 : index
    %119 = vector.load %arg4[%c4, %c0_33, %c0_34] : memref<8x32x16xf32, #tpu.memory_space<vmem>>, vector<1x32x16xf32>
    %120 = vector.shape_cast %119 : vector<1x32x16xf32> to vector<32x16xf32>
    %cst_35 = arith.constant dense<0.000000e+00> : vector<2x16xf32>
    %121 = tpu.matmul %118, %120, %cst_35 {dimension_numbers = #tpu.dot_dimension_numbers<[1], [0], [0], [1], [0, 0, 1, 1], [], []>} : vector<2x32xf32>, vector<32x16xf32>, vector<2x16xf32> -> vector<2x16xf32>
    %122 = arith.addf %101, %121 : vector<2x16xf32>
    %cst_36 = arith.constant dense<0.000000e+00> : vector<2x128xf32>
    %123 = tpu.matmul %118, %14, %cst_36 {dimension_numbers = #tpu.dot_dimension_numbers<[1], [0], [0], [1], [0, 0, 1, 1], [], []>} : vector<2x32xf32>, vector<32x128xf32>, vector<2x128xf32> -> vector<2x128xf32>
    %124 = arith.addf %11, %123 : vector<2x128xf32>
    %125 = arith.negf %124 : vector<2x128xf32>
    %126 = math.exp %125 : vector<2x128xf32>
    %cst_37 = arith.constant 1.000000e+00 : f32
    %127 = vector.broadcast %cst_37 : f32 to vector<2x128xf32>
    %128 = arith.addf %127, %126 : vector<2x128xf32>
    %129 = arith.divf %127, %128 : vector<2x128xf32>
    %130 = math.tanh %124 : vector<2x128xf32>
    %131 = vector.extract_strided_slice %129 {offsets = [0, 0], sizes = [2, 32], strides = [1, 1]} : vector<2x128xf32> to vector<2x32xf32>
    %132 = vector.extract_strided_slice %129 {offsets = [0, 32], sizes = [2, 32], strides = [1, 1]} : vector<2x128xf32> to vector<2x32xf32>
    %133 = vector.extract_strided_slice %130 {offsets = [0, 64], sizes = [2, 32], strides = [1, 1]} : vector<2x128xf32> to vector<2x32xf32>
    %134 = vector.extract_strided_slice %129 {offsets = [0, 96], sizes = [2, 32], strides = [1, 1]} : vector<2x128xf32> to vector<2x32xf32>
    %135 = arith.mulf %132, %116 : vector<2x32xf32>
    %136 = arith.mulf %131, %133 : vector<2x32xf32>
    %137 = arith.addf %135, %136 : vector<2x32xf32>
    %138 = math.tanh %137 : vector<2x32xf32>
    %139 = arith.mulf %134, %138 : vector<2x32xf32>
    %c5 = arith.constant 5 : index
    %c0_38 = arith.constant 0 : index
    %c0_39 = arith.constant 0 : index
    %140 = vector.load %arg4[%c5, %c0_38, %c0_39] : memref<8x32x16xf32, #tpu.memory_space<vmem>>, vector<1x32x16xf32>
    %141 = vector.shape_cast %140 : vector<1x32x16xf32> to vector<32x16xf32>
    %cst_40 = arith.constant dense<0.000000e+00> : vector<2x16xf32>
    %142 = tpu.matmul %139, %141, %cst_40 {dimension_numbers = #tpu.dot_dimension_numbers<[1], [0], [0], [1], [0, 0, 1, 1], [], []>} : vector<2x32xf32>, vector<32x16xf32>, vector<2x16xf32> -> vector<2x16xf32>
    %143 = arith.addf %122, %142 : vector<2x16xf32>
    %cst_41 = arith.constant dense<0.000000e+00> : vector<2x128xf32>
    %144 = tpu.matmul %139, %14, %cst_41 {dimension_numbers = #tpu.dot_dimension_numbers<[1], [0], [0], [1], [0, 0, 1, 1], [], []>} : vector<2x32xf32>, vector<32x128xf32>, vector<2x128xf32> -> vector<2x128xf32>
    %145 = arith.addf %12, %144 : vector<2x128xf32>
    %146 = arith.negf %145 : vector<2x128xf32>
    %147 = math.exp %146 : vector<2x128xf32>
    %cst_42 = arith.constant 1.000000e+00 : f32
    %148 = vector.broadcast %cst_42 : f32 to vector<2x128xf32>
    %149 = arith.addf %148, %147 : vector<2x128xf32>
    %150 = arith.divf %148, %149 : vector<2x128xf32>
    %151 = math.tanh %145 : vector<2x128xf32>
    %152 = vector.extract_strided_slice %150 {offsets = [0, 0], sizes = [2, 32], strides = [1, 1]} : vector<2x128xf32> to vector<2x32xf32>
    %153 = vector.extract_strided_slice %150 {offsets = [0, 32], sizes = [2, 32], strides = [1, 1]} : vector<2x128xf32> to vector<2x32xf32>
    %154 = vector.extract_strided_slice %151 {offsets = [0, 64], sizes = [2, 32], strides = [1, 1]} : vector<2x128xf32> to vector<2x32xf32>
    %155 = vector.extract_strided_slice %150 {offsets = [0, 96], sizes = [2, 32], strides = [1, 1]} : vector<2x128xf32> to vector<2x32xf32>
    %156 = arith.mulf %153, %137 : vector<2x32xf32>
    %157 = arith.mulf %152, %154 : vector<2x32xf32>
    %158 = arith.addf %156, %157 : vector<2x32xf32>
    %159 = math.tanh %158 : vector<2x32xf32>
    %160 = arith.mulf %155, %159 : vector<2x32xf32>
    %c6 = arith.constant 6 : index
    %c0_43 = arith.constant 0 : index
    %c0_44 = arith.constant 0 : index
    %161 = vector.load %arg4[%c6, %c0_43, %c0_44] : memref<8x32x16xf32, #tpu.memory_space<vmem>>, vector<1x32x16xf32>
    %162 = vector.shape_cast %161 : vector<1x32x16xf32> to vector<32x16xf32>
    %cst_45 = arith.constant dense<0.000000e+00> : vector<2x16xf32>
    %163 = tpu.matmul %160, %162, %cst_45 {dimension_numbers = #tpu.dot_dimension_numbers<[1], [0], [0], [1], [0, 0, 1, 1], [], []>} : vector<2x32xf32>, vector<32x16xf32>, vector<2x16xf32> -> vector<2x16xf32>
    %164 = arith.addf %143, %163 : vector<2x16xf32>
    %cst_46 = arith.constant dense<0.000000e+00> : vector<2x128xf32>
    %165 = tpu.matmul %160, %14, %cst_46 {dimension_numbers = #tpu.dot_dimension_numbers<[1], [0], [0], [1], [0, 0, 1, 1], [], []>} : vector<2x32xf32>, vector<32x128xf32>, vector<2x128xf32> -> vector<2x128xf32>
    %166 = arith.addf %13, %165 : vector<2x128xf32>
    %167 = arith.negf %166 : vector<2x128xf32>
    %168 = math.exp %167 : vector<2x128xf32>
    %cst_47 = arith.constant 1.000000e+00 : f32
    %169 = vector.broadcast %cst_47 : f32 to vector<2x128xf32>
    %170 = arith.addf %169, %168 : vector<2x128xf32>
    %171 = arith.divf %169, %170 : vector<2x128xf32>
    %172 = math.tanh %166 : vector<2x128xf32>
    %173 = vector.extract_strided_slice %171 {offsets = [0, 0], sizes = [2, 32], strides = [1, 1]} : vector<2x128xf32> to vector<2x32xf32>
    %174 = vector.extract_strided_slice %171 {offsets = [0, 32], sizes = [2, 32], strides = [1, 1]} : vector<2x128xf32> to vector<2x32xf32>
    %175 = vector.extract_strided_slice %172 {offsets = [0, 64], sizes = [2, 32], strides = [1, 1]} : vector<2x128xf32> to vector<2x32xf32>
    %176 = vector.extract_strided_slice %171 {offsets = [0, 96], sizes = [2, 32], strides = [1, 1]} : vector<2x128xf32> to vector<2x32xf32>
    %177 = arith.mulf %174, %158 : vector<2x32xf32>
    %178 = arith.mulf %173, %175 : vector<2x32xf32>
    %179 = arith.addf %177, %178 : vector<2x32xf32>
    %180 = math.tanh %179 : vector<2x32xf32>
    %181 = arith.mulf %176, %180 : vector<2x32xf32>
    %c7 = arith.constant 7 : index
    %c0_48 = arith.constant 0 : index
    %c0_49 = arith.constant 0 : index
    %182 = vector.load %arg4[%c7, %c0_48, %c0_49] : memref<8x32x16xf32, #tpu.memory_space<vmem>>, vector<1x32x16xf32>
    %183 = vector.shape_cast %182 : vector<1x32x16xf32> to vector<32x16xf32>
    %cst_50 = arith.constant dense<0.000000e+00> : vector<2x16xf32>
    %184 = tpu.matmul %181, %183, %cst_50 {dimension_numbers = #tpu.dot_dimension_numbers<[1], [0], [0], [1], [0, 0, 1, 1], [], []>} : vector<2x32xf32>, vector<32x16xf32>, vector<2x16xf32> -> vector<2x16xf32>
    %185 = arith.addf %164, %184 : vector<2x16xf32>
    %c0_51 = arith.constant 0 : index
    %c0_52 = arith.constant 0 : index
    %186 = vector.load %arg5[%c0_51, %c0_52] : memref<1x16xf32, #tpu.memory_space<vmem>>, vector<1x16xf32>
    %187 = vector.broadcast %186 : vector<1x16xf32> to vector<2x16xf32>
    %188 = arith.addf %185, %187 : vector<2x16xf32>
    %c0_53 = arith.constant 0 : index
    %c0_54 = arith.constant 0 : index
    %189 = vector.load %arg6[%c0_53, %c0_54] : memref<2x16xf32, #tpu.memory_space<vmem>>, vector<2x16xf32>
    tpu.vector_store %arg6[%c0_53, %c0_54], %188 {strides = array<i32>} : memref<2x16xf32, #tpu.memory_space<vmem>>, vector<2x16xf32>,
    %c0_55 = arith.constant 0 : index
    %c0_56 = arith.constant 0 : index
    %190 = vector.load %arg7[%c0_55, %c0_56] : memref<2x32xf32, #tpu.memory_space<vmem>>, vector<2x32xf32>
    tpu.vector_store %arg7[%c0_55, %c0_56], %181 {strides = array<i32>} : memref<2x32xf32, #tpu.memory_space<vmem>>, vector<2x32xf32>,
    %c0_57 = arith.constant 0 : index
    %c0_58 = arith.constant 0 : index
    %191 = vector.load %arg8[%c0_57, %c0_58] : memref<2x32xf32, #tpu.memory_space<vmem>>, vector<2x32xf32>
    tpu.vector_store %arg8[%c0_57, %c0_58], %179 {strides = array<i32>} : memref<2x32xf32, #tpu.memory_space<vmem>>, vector<2x32xf32>,
    return
  }
}

</mosaic_0001>

<llo_original>
// kernel: tile.11
$region0: #{tile.11}
  #allocation0 [shape = 's32[1]{0}', space=sflag, size = 0x4, scoped, tag = 'scoped memory for tile.11']
  %s0 = inlined_call_operand.vmem [shape: f32[4], index: 0, kind: input, shape index: {}]
  %s1 = inlined_call_operand.vmem [shape: f32[2,4], index: 1, kind: output, shape index: {}]
  // Predicated region
  $region2: #{tile.11} parent=0 // pred_check
    _
  $region3: #{tile.11} parent=0 // pred_check_branch
    %3 = sbr.rel (0) target = $region5
  $region4: #{tile.11} parent=0 // pred_region
    _
  $region5: #{tile.11} parent=0 // pred_fallthru
    _
  %v4 = vld [vmem:[%s0] ss:$0 sm:$0xff]
  %5 = vst [vmem:[%s1] sm:$0x3] %v4

// kernel: tile.12
$region0: #{tile.12}
  %s0 = inlined_call_operand.vmem [shape: f32[2,4], index: 0, kind: input, shape index: {}]
  %s1 = inlined_call_operand.vmem [shape: f32[8], index: 1, kind: output, shape index: {}]
  $region1: #{tile.12} parent=0
    #allocation0 [shape = 'u8[4096]{0}', space=vmem, size = 0x1000, scoped, tag = 'scoped mem for output reshape']
    #allocation1 [shape = 'u8[4096]{0}', space=vmem, size = 0x1000, scoped, tag = 'scoped mem for input reshape']
    %s3 = sshllo.u32 0, 2
    %v4 = vld [vmem:[%s0] sm:%s3]
    %5 = vst [vmem:[#allocation1] sm:%s3] %v4
    %v6 = vld [vmem:[#allocation1] sm:$0x1]
    %vm7 = vcmask 31744
    %8 = vst.msk [vmem:[#allocation0] sm:$0x1] %vm7, %v6
    %s9 = scalar_lea.vmem [#allocation1], 1
    %v10 = vld [vmem:[%s9] sm:$0x1]
    %11 = vrot.lane.b32.xlu0 %v10, 4
    %v12 = vpop.permute.xlu0 %11
    %vm13 = vcmask 64544
    %14 = vst.msk [vmem:[#allocation0] sm:$0x1] %vm13, %v12
    %s16 = sshllo.u32 0, 1
    %v18 = vld [vmem:[#allocation0] sm:%s16]
    %s19 = sshllo.u32 0, 1
    %20 = vst [vmem:[%s1] sm:%s19] %v18

// kernel: tile.16
$region0: #{tile.16}
  #allocation0 [shape = 's32[1]{0}', space=sflag, size = 0x4, scoped, tag = 'scoped memory for tile.16']
  %s0 = inlined_call_operand.vmem [shape: f32[4], index: 0, kind: input, shape index: {}]
  %s1 = inlined_call_operand.vmem [shape: f32[4,4], index: 1, kind: output, shape index: {}]
  // Predicated region
  $region2: #{tile.16} parent=0 // pred_check
    _
  $region3: #{tile.16} parent=0 // pred_check_branch
    %3 = sbr.rel (0) target = $region5
  $region4: #{tile.16} parent=0 // pred_region
    _
  $region5: #{tile.16} parent=0 // pred_fallthru
    _
  %v4 = vld [vmem:[%s0] ss:$0 sm:$0xff]
  %5 = vst [vmem:[%s1] sm:$0xf] %v4

// kernel: tile.17
$region0: #{tile.17}
  %s0 = inlined_call_operand.vmem [shape: f32[4,4], index: 0, kind: input, shape index: {}]
  %s1 = inlined_call_operand.vmem [shape: f32[1,16], index: 1, kind: output, shape index: {}]
  $region1: #{tile.17} parent=0
    #allocation0 [shape = 'u8[4096]{0}', space=vmem, size = 0x1000, scoped, tag = 'scoped mem for output reshape']
    #allocation1 [shape = 'u8[4096]{0}', space=vmem, size = 0x1000, scoped, tag = 'scoped mem for input reshape']
    %s3 = sshllo.u32 0, 4
    %v4 = vld [vmem:[%s0] sm:%s3]
    %5 = vst [vmem:[#allocation1] sm:%s3] %v4
    %v6 = vld [vmem:[#allocation1] sm:$0x1]
    %vm7 = vcmask 31744
    %8 = vst.msk [vmem:[#allocation0] sm:$0x1] %vm7, %v6
    %s9 = scalar_lea.vmem [#allocation1], 3
    %v10 = vld [vmem:[%s9] sm:$0x1]
    %11 = vrot.lane.b32.xlu0 %v10, 12
    %v12 = vpop.permute.xlu0 %11
    %vm13 = vcmask 130144
    %14 = vst.msk [vmem:[#allocation0] sm:$0x1] %vm13, %v12
    %s15 = scalar_lea.vmem [#allocation1], 2
    %v16 = vld [vmem:[%s15] sm:$0x1]
    %17 = vrot.lane.b32.xlu0 %v16, 8
    %v18 = vpop.permute.xlu0 %17
    %vm19 = vcmask 97344
    %20 = vst.msk [vmem:[#allocation0] sm:$0x1] %vm19, %v18
    %s21 = scalar_lea.vmem [#allocation1], 1
    %v22 = vld [vmem:[%s21] sm:$0x1]
    %23 = vrot.lane.b32.xlu0 %v22, 4
    %v24 = vpop.permute.xlu0 %23
    %vm25 = vcmask 64544
    %26 = vst.msk [vmem:[#allocation0] sm:$0x1] %vm25, %v24
    %s28 = sshllo.u32 0, 1
    %v30 = vld [vmem:[#allocation0] sm:%s28]
    %s31 = sshllo.u32 0, 1
    %32 = vst [vmem:[%s1] sm:%s31] %v30

// kernel: lstm_base_net_forward.1
$region0: #{lstm_base_net_forward.1}
  #allocation0 [shape = 'u32[]', space=smem, size = 0x4, offset = 0x4, fixed_abs, tag = 'smem constant byte address 0x4 - core index']
  #allocation1 [shape = 'u32[144,128]{1,0:T(1,128)}', space=vmem, size = 0x12000, scoped, tag = 'internal scratch']
  %s0 = inlined_call_operand.vmem [shape: f32[16,4], index: 0, kind: input, shape index: {}]
  %s1 = inlined_call_operand.vmem [shape: f32[4,128], index: 1, kind: input, shape index: {}]
  %s2 = inlined_call_operand.vmem [shape: f32[32,128], index: 2, kind: input, shape index: {}]
  %s3 = inlined_call_operand.vmem [shape: f32[1,128], index: 3, kind: input, shape index: {}]
  %s4 = inlined_call_operand.vmem [shape: f32[8,32,16], index: 4, kind: input, shape index: {}]
  %s5 = inlined_call_operand.vmem [shape: f32[1,16], index: 5, kind: input, shape index: {}]
  %s6 = inlined_call_operand.vmem [shape: f32[2,16], index: 6, kind: output, shape index: {0}]
  %s7 = inlined_call_operand.hbm [shape: f32[2,32], index: 7, kind: output, shape index: {1}]
  %s8 = inlined_call_operand.hbm [shape: f32[2,32], index: 8, kind: output, shape index: {2}]
  %9 = xla_tuple %s6, %s7, %s8
  %s10 = sld [smem:[#allocation0]]
  $region50: #{lstm_base_net_forward.1} parent=0
    _
  %s12 = ssub.s32 1, %s10
  %s13 = scalar_select 0, %s12, %s10
  $region1: #{lstm_base_net_forward.1} parent=0
    #allocation2 [shape = 'u8[1024]{0}', space=vmem, size = 0x400, scoped, tag = 'output window, operand 1, single buffered']
    #allocation3 [shape = 's32[1]{0}', space=sflag, size = 0x4, scoped, tag = 'scoped memory for lstm_base_net_forward.1']
    #allocation4 [shape = 'u8[1024]{0}', space=vmem, size = 0x400, scoped, tag = 'output window, operand 2, single buffered']
    #allocation5 [shape = 's32[1]{0}', space=sflag, size = 0x4, scoped, tag = 'scoped memory for lstm_base_net_forward.1']
    %14 = vsyncpa [#allocation3], 0
    %15 = vsyncpa [#allocation5], 0
    // Predicated region
    $region2: #{lstm_base_net_forward.1} parent=1 // pred_check
      _
    $region3: #{lstm_base_net_forward.1} parent=1 // pred_check_branch
      %17 = sbr.rel (0) target = $region5
    $region4: #{lstm_base_net_forward.1} parent=1 // pred_region
      _
    $region5: #{lstm_base_net_forward.1} parent=1 // pred_fallthru
      _
    // Predicated region
    $region6: #{lstm_base_net_forward.1} parent=1 // pred_check
      _
    $region7: #{lstm_base_net_forward.1} parent=1 // pred_check_branch
      %19 = sbr.rel (0) target = $region9
    $region8: #{lstm_base_net_forward.1} parent=1 // pred_region
      _
    $region9: #{lstm_base_net_forward.1} parent=1 // pred_fallthru
      _
    // Predicated region
    $region10: #{lstm_base_net_forward.1} parent=1 // pred_check
      _
    $region11: #{lstm_base_net_forward.1} parent=1 // pred_check_branch
      %21 = sbr.rel (0) target = $region13
    $region12: #{lstm_base_net_forward.1} parent=1 // pred_region
      _
    $region13: #{lstm_base_net_forward.1} parent=1 // pred_fallthru
      _
    // Predicated region
    $region14: #{lstm_base_net_forward.1} parent=1 // pred_check
      _
    $region15: #{lstm_base_net_forward.1} parent=1 // pred_check_branch
      %23 = sbr.rel (0) target = $region17
    $region16: #{lstm_base_net_forward.1} parent=1 // pred_region
      _
    $region17: #{lstm_base_net_forward.1} parent=1 // pred_fallthru
      _
    // Predicated region
    $region18: #{lstm_base_net_forward.1} parent=1 // pred_check
      _
    $region19: #{lstm_base_net_forward.1} parent=1 // pred_check_branch
      %25 = sbr.rel (0) target = $region21
    $region20: #{lstm_base_net_forward.1} parent=1 // pred_region
      _
    $region21: #{lstm_base_net_forward.1} parent=1 // pred_fallthru
      _
    // Predicated region
    $region22: #{lstm_base_net_forward.1} parent=1 // pred_check
      _
    $region23: #{lstm_base_net_forward.1} parent=1 // pred_check_branch
      %27 = sbr.rel (0) target = $region25
    $region24: #{lstm_base_net_forward.1} parent=1 // pred_region
      _
    $region25: #{lstm_base_net_forward.1} parent=1 // pred_fallthru
      _
    %v28 = vld [vmem:[%s0] sm:$0xff]
    %v29 = vld [vmem:[%s0 + $0x8] sm:$0xff]
    %v30 = vld [vmem:[%s1] sm:$0xf]
    %v31 = vld [vmem:[%s3] sm:$0x1]
    %v33 = vlaneseq
    %v34 = vshrl.u32 %v33, 7
    %v35 = vsub.s32 0, %v34
    %v36 = vrot.slane %v31, %v35
    %vm38 = vcmask 31744
    %v40 = vsel %vm38, %v28, 0
    %v43 = vsel %vm38, %v29, 0
    %vm45 = vcmask 1043456
    %v47 = vsel %vm45, %v30, 0
    %49 = vmatprep.subr.mxu0 0.0
    %50 = vmatpush1.msra.mxu0 %v47
    %51 = vmatprep.subr.mxu0 0.0
    %52 = vmatpush1.msra.mxu0 0.0
    %53 = vmatprep.subr.mxu0 0.0
    %54 = vmatpush1.msra.mxu0 0.0
    %55 = vmatprep.subr.mxu0 0.0
    %56 = vmatpush1.msra.mxu0 0.0
    %57 = vmatprep.subr.mxu0 0.0
    %58 = vmatpush1.msra.mxu0 0.0
    %59 = vmatprep.subr.mxu0 0.0
    %60 = vmatpush1.msra.mxu0 0.0
    %61 = vmatprep.subr.mxu0 0.0
    %62 = vmatpush1.msra.mxu0 0.0
    %63 = vmatprep.subr.mxu0 0.0
    %64 = vmatpush1.msra.mxu0 0.0
    %65 = vmatprep.subr.mxu0 0.0
    %66 = vmatpush1.msra.mxu0 0.0
    %67 = vmatprep.subr.mxu0 0.0
    %68 = vmatpush1.msra.mxu0 0.0
    %69 = vmatprep.subr.mxu0 0.0
    %70 = vmatpush1.msra.mxu0 0.0
    %71 = vmatprep.subr.mxu0 0.0
    %72 = vmatpush1.msra.mxu0 0.0
    %73 = vmatprep.subr.mxu0 0.0
    %74 = vmatpush1.msra.mxu0 0.0
    %75 = vmatprep.subr.mxu0 0.0
    %76 = vmatpush1.msra.mxu0 0.0
    %77 = vmatprep.subr.mxu0 0.0
    %78 = vmatpush1.msra.mxu0 0.0
    %79 = vmatprep.subr.mxu0 0.0
    %80 = vmatpush1.msra.mxu0 0.0
    %81 = vmatprep.subr.mxu0 0.0
    %82 = vmatpush1.msra.mxu0 0.0
    %83 = vmatprep.subr.mxu0 0.0
    %84 = vmatpush1.msra.mxu0 0.0
    %85 = vmatprep.subr.mxu0 0.0
    %86 = vmatpush1.msra.mxu0 0.0
    %87 = vmatprep.subr.mxu0 0.0
    %88 = vmatpush1.msra.mxu0 0.0
    %89 = vmatprep.subr.mxu0 0.0
    %90 = vmatpush1.msra.mxu0 0.0
    %91 = vmatprep.subr.mxu0 0.0
    %92 = vmatpush1.msra.mxu0 0.0
    %93 = vmatprep.subr.mxu0 0.0
    %94 = vmatpush1.msra.mxu0 0.0
    %95 = vmatprep.subr.mxu0 0.0
    %96 = vmatpush1.msra.mxu0 0.0
    %97 = vmatprep.subr.mxu0 0.0
    %98 = vmatpush1.msra.mxu0 0.0
    %99 = vmatprep.subr.mxu0 0.0
    %100 = vmatpush1.msra.mxu0 0.0
    %101 = vmatprep.subr.mxu0 0.0
    %102 = vmatpush1.msra.mxu0 0.0
    %103 = vmatprep.subr.mxu0 0.0
    %104 = vmatpush1.msra.mxu0 0.0
    %105 = vmatprep.subr.mxu0 0.0
    %106 = vmatpush1.msra.mxu0 0.0
    %107 = vmatprep.subr.mxu0 0.0
    %108 = vmatpush1.msra.mxu0 0.0
    %109 = vmatprep.subr.mxu0 0.0
    %110 = vmatpush1.msra.mxu0 0.0
    %111 = vmatprep.subr.mxu0 0.0
    %112 = vmatpush1.msra.mxu0 0.0
    %113 = vmatprep.mubr.f32.mxu0 0.0
    %114 = vmatmul.mubr.f32.gmra.mrb[0].mxu0 %v40
    %v115 = vpop.f32.mrb[0].mxu0
    %v116 = vadd.f32 %v36, %v115
    %v117 = vpop.f32.mrb[0].mxu0
    %118 = vmatprep.mubr.f32.mxu0 0.0
    %119 = vmatmul.mubr.f32.gmra.mrb[0].mxu0 %v43
    %v120 = vpop.f32.mrb[0].mxu0
    %v121 = vadd.f32 %v36, %v120
    %v122 = vpop.f32.mrb[0].mxu0
    %123 = vdwg.mxu0
    %v124 = vld [vmem:[%s2] sm:$0xff]
    %v125 = vld [vmem:[%s2 + $0x8] sm:$0xff]
    %v126 = vld [vmem:[%s2 + $0x10] sm:$0xff]
    %v127 = vld [vmem:[%s2 + $0x18] sm:$0xff]
    %vm128 = vcmask 261120
    %v130 = vsel %vm128, 0.0, 0
    %132 = vmatprep.subr.mxu0 0.0
    %133 = vmatpush1.msra.mxu0 %v124
    %134 = vmatprep.subr.mxu0 0.0
    %135 = vmatpush1.msra.mxu0 %v125
    %136 = vmatprep.subr.mxu0 0.0
    %137 = vmatpush1.msra.mxu0 %v126
    %138 = vmatprep.subr.mxu0 0.0
    %139 = vmatpush1.msra.mxu0 %v127
    %140 = vmatprep.subr.mxu0 0.0
    %141 = vmatpush1.msra.mxu0 0.0
    %142 = vmatprep.subr.mxu0 0.0
    %143 = vmatpush1.msra.mxu0 0.0
    %144 = vmatprep.subr.mxu0 0.0
    %145 = vmatpush1.msra.mxu0 0.0
    %146 = vmatprep.subr.mxu0 0.0
    %147 = vmatpush1.msra.mxu0 0.0
    %148 = vmatprep.subr.mxu0 0.0
    %149 = vmatpush1.msra.mxu0 0.0
    %150 = vmatprep.subr.mxu0 0.0
    %151 = vmatpush1.msra.mxu0 0.0
    %152 = vmatprep.subr.mxu0 0.0
    %153 = vmatpush1.msra.mxu0 0.0
    %154 = vmatprep.subr.mxu0 0.0
    %155 = vmatpush1.msra.mxu0 0.0
    %156 = vmatprep.subr.mxu0 0.0
    %157 = vmatpush1.msra.mxu0 0.0
    %158 = vmatprep.subr.mxu0 0.0
    %159 = vmatpush1.msra.mxu0 0.0
    %160 = vmatprep.subr.mxu0 0.0
    %161 = vmatpush1.msra.mxu0 0.0
    %162 = vmatprep.subr.mxu0 0.0
    %163 = vmatpush1.msra.mxu0 0.0
    %164 = vmatprep.subr.mxu0 0.0
    %165 = vmatpush1.msra.mxu0 0.0
    %166 = vmatprep.subr.mxu0 0.0
    %167 = vmatpush1.msra.mxu0 0.0
    %168 = vmatprep.subr.mxu0 0.0
    %169 = vmatpush1.msra.mxu0 0.0
    %170 = vmatprep.subr.mxu0 0.0
    %171 = vmatpush1.msra.mxu0 0.0
    %172 = vmatprep.subr.mxu0 0.0
    %173 = vmatpush1.msra.mxu0 0.0
    %174 = vmatprep.subr.mxu0 0.0
    %175 = vmatpush1.msra.mxu0 0.0
    %176 = vmatprep.subr.mxu0 0.0
    %177 = vmatpush1.msra.mxu0 0.0
    %178 = vmatprep.subr.mxu0 0.0
    %179 = vmatpush1.msra.mxu0 0.0
    %180 = vmatprep.subr.mxu0 0.0
    %181 = vmatpush1.msra.mxu0 0.0
    %182 = vmatprep.subr.mxu0 0.0
    %183 = vmatpush1.msra.mxu0 0.0
    %184 = vmatprep.subr.mxu0 0.0
    %185 = vmatpush1.msra.mxu0 0.0
    %186 = vmatprep.subr.mxu0 0.0
    %187 = vmatpush1.msra.mxu0 0.0
    %188 = vmatprep.subr.mxu0 0.0
    %189 = vmatpush1.msra.mxu0 0.0
    %190 = vmatprep.subr.mxu0 0.0
    %191 = vmatpush1.msra.mxu0 0.0
    %192 = vmatprep.subr.mxu0 0.0
    %193 = vmatpush1.msra.mxu0 0.0
    %194 = vmatprep.subr.mxu0 0.0
    %195 = vmatpush1.msra.mxu0 0.0
    %196 = vmatprep.mubr.f32.mxu0 0.0
    %197 = vmatmul.mubr.f32.gmra.mrb[0].mxu0 %v130
    %v198 = vpop.f32.mrb[0].mxu0
    %v199 = vadd.f32 0.0, %v198
    %v200 = vpop.f32.mrb[0].mxu0
    %201 = vdwg.mxu0
    %v202 = vadd.f32 %v116, %v199
    %v203 = vxor.u32 %v202, 2147483648
    %v204 = vmul.f32 %v203, 1.442695
    %v205 = vpow.pop %v204
    %v206 = vadd.f32 %v205, 1.0
    %v207 = vrcp.pop %v206
    %v208 = vmul.f32 1.0, %v207
    %v209 = vtanh.pop %v202
    %v210 = vmul.f32 %v208, 0.0
    %212 = vrot.lane.b32.xlu0 %v209, 64
    %v213 = vpop.permute.xlu0 %212
    %v215 = vmul.f32 %v208, %v213
    %217 = vrot.lane.b32.xlu0 %v215, 32
    %v218 = vpop.permute.xlu0 %217
    %v220 = vadd.f32 %v210, %v218
    %v221 = vtanh.pop %v220
    %223 = vrot.lane.b32.xlu0 %v221, 64
    %v224 = vpop.permute.xlu0 %223
    %v226 = vmul.f32 %v208, %v224
    %v227 = vld [vmem:[%s4] sm:$0xff]
    %v228 = vld [vmem:[%s4 + $0x8] sm:$0xff]
    %v229 = vld [vmem:[%s4 + $0x10] sm:$0xff]
    %v230 = vld [vmem:[%s4 + $0x18] sm:$0xff]
    %232 = vrot.lane.b32.xlu0 %v226, 32
    %v233 = vpop.permute.xlu0 %232
    %v234 = vsel %vm128, %v233, 0
    %236 = vmatprep.subr.mxu0 0.0
    %237 = vmatpush1.msra.mxu0 %v124
    %238 = vmatprep.subr.mxu0 0.0
    %239 = vmatpush1.msra.mxu0 %v125
    %240 = vmatprep.subr.mxu0 0.0
    %241 = vmatpush1.msra.mxu0 %v126
    %242 = vmatprep.subr.mxu0 0.0
    %243 = vmatpush1.msra.mxu0 %v127
    %244 = vmatprep.subr.mxu0 0.0
    %245 = vmatpush1.msra.mxu0 0.0
    %246 = vmatprep.subr.mxu0 0.0
    %247 = vmatpush1.msra.mxu0 0.0
    %248 = vmatprep.subr.mxu0 0.0
    %249 = vmatpush1.msra.mxu0 0.0
    %250 = vmatprep.subr.mxu0 0.0
    %251 = vmatpush1.msra.mxu0 0.0
    %252 = vmatprep.subr.mxu0 0.0
    %253 = vmatpush1.msra.mxu0 0.0
    %254 = vmatprep.subr.mxu0 0.0
    %255 = vmatpush1.msra.mxu0 0.0
    %256 = vmatprep.subr.mxu0 0.0
    %257 = vmatpush1.msra.mxu0 0.0
    %258 = vmatprep.subr.mxu0 0.0
    %259 = vmatpush1.msra.mxu0 0.0
    %260 = vmatprep.subr.mxu0 0.0
    %261 = vmatpush1.msra.mxu0 0.0
    %262 = vmatprep.subr.mxu0 0.0
    %263 = vmatpush1.msra.mxu0 0.0
    %264 = vmatprep.subr.mxu0 0.0
    %265 = vmatpush1.msra.mxu0 0.0
    %266 = vmatprep.subr.mxu0 0.0
    %267 = vmatpush1.msra.mxu0 0.0
    %268 = vmatprep.subr.mxu0 0.0
    %269 = vmatpush1.msra.mxu0 0.0
    %270 = vmatprep.subr.mxu0 0.0
    %271 = vmatpush1.msra.mxu0 0.0
    %272 = vmatprep.subr.mxu0 0.0
    %273 = vmatpush1.msra.mxu0 0.0
    %274 = vmatprep.subr.mxu0 0.0
    %275 = vmatpush1.msra.mxu0 0.0
    %276 = vmatprep.subr.mxu0 0.0
    %277 = vmatpush1.msra.mxu0 0.0
    %278 = vmatprep.subr.mxu0 0.0
    %279 = vmatpush1.msra.mxu0 0.0
    %280 = vmatprep.subr.mxu0 0.0
    %281 = vmatpush1.msra.mxu0 0.0
    %282 = vmatprep.subr.mxu0 0.0
    %283 = vmatpush1.msra.mxu0 0.0
    %284 = vmatprep.subr.mxu0 0.0
    %285 = vmatpush1.msra.mxu0 0.0
    %286 = vmatprep.subr.mxu0 0.0
    %287 = vmatpush1.msra.mxu0 0.0
    %288 = vmatprep.subr.mxu0 0.0
    %289 = vmatpush1.msra.mxu0 0.0
    %290 = vmatprep.subr.mxu0 0.0
    %291 = vmatpush1.msra.mxu0 0.0
    %292 = vmatprep.subr.mxu0 0.0
    %293 = vmatpush1.msra.mxu0 0.0
    %294 = vmatprep.subr.mxu0 0.0
    %295 = vmatpush1.msra.mxu0 0.0
    %296 = vmatprep.subr.mxu0 0.0
    %297 = vmatpush1.msra.mxu0 0.0
    %298 = vmatprep.subr.mxu0 0.0
    %299 = vmatpush1.msra.mxu0 0.0
    %300 = vmatprep.mubr.f32.mxu0 0.0
    %301 = vmatmul.mubr.f32.gmra.mrb[0].mxu0 %v234
    %v302 = vpop.f32.mrb[0].mxu0
    %v303 = vadd.f32 0.0, %v302
    %v304 = vpop.f32.mrb[0].mxu0
    %305 = vdwg.mxu0
    %v307 = vrot.slane %v303, 6
    %v309 = vadd.f32 %v116, %v307
    %v310 = vxor.u32 %v309, 2147483648
    %v311 = vmul.f32 %v310, 1.442695
    %v312 = vpow.pop %v311
    %v313 = vadd.f32 %v312, 1.0
    %v314 = vrcp.pop %v313
    %v315 = vmul.f32 1.0, %v314
    %v316 = vtanh.pop %v309
    %v318 = vrot.slane %v220, 6
    %v320 = vmul.f32 %v315, %v318
    %322 = vrot.lane.b32.xlu0 %v316, 64
    %v323 = vpop.permute.xlu0 %322
    %v325 = vmul.f32 %v315, %v323
    %327 = vrot.lane.b32.xlu0 %v325, 32
    %v328 = vpop.permute.xlu0 %327
    %v330 = vadd.f32 %v320, %v328
    %v331 = vtanh.pop %v330
    %333 = vrot.lane.b32.xlu0 %v331, 64
    %v334 = vpop.permute.xlu0 %333
    %v336 = vmul.f32 %v315, %v334
    %s337 = scalar_lea.vmem %s4, 32
    %v338 = vld [vmem:[%s337] sm:$0xff]
    %v339 = vld [vmem:[%s337 + $0x8] sm:$0xff]
    %v340 = vld [vmem:[%s337 + $0x10] sm:$0xff]
    %v341 = vld [vmem:[%s337 + $0x18] sm:$0xff]
    %v343 = vrot.slane %v336, 2
    %344 = vrot.lane.b32.xlu0 %v343, 32
    %v345 = vpop.permute.xlu0 %344
    %v346 = vsel %vm128, %v345, 0
    %348 = vmatprep.subr.mxu0 0.0
    %349 = vmatpush1.msra.mxu0 %v338
    %350 = vmatprep.subr.mxu0 0.0
    %351 = vmatpush1.msra.mxu0 %v339
    %352 = vmatprep.subr.mxu0 0.0
    %353 = vmatpush1.msra.mxu0 %v340
    %354 = vmatprep.subr.mxu0 0.0
    %355 = vmatpush1.msra.mxu0 %v341
    %356 = vmatprep.subr.mxu0 0.0
    %357 = vmatpush1.msra.mxu0 0.0
    %358 = vmatprep.subr.mxu0 0.0
    %359 = vmatpush1.msra.mxu0 0.0
    %360 = vmatprep.subr.mxu0 0.0
    %361 = vmatpush1.msra.mxu0 0.0
    %362 = vmatprep.subr.mxu0 0.0
    %363 = vmatpush1.msra.mxu0 0.0
    %364 = vmatprep.subr.mxu0 0.0
    %365 = vmatpush1.msra.mxu0 0.0
    %366 = vmatprep.subr.mxu0 0.0
    %367 = vmatpush1.msra.mxu0 0.0
    %368 = vmatprep.subr.mxu0 0.0
    %369 = vmatpush1.msra.mxu0 0.0
    %370 = vmatprep.subr.mxu0 0.0
    %371 = vmatpush1.msra.mxu0 0.0
    %372 = vmatprep.subr.mxu0 0.0
    %373 = vmatpush1.msra.mxu0 0.0
    %374 = vmatprep.subr.mxu0 0.0
    %375 = vmatpush1.msra.mxu0 0.0
    %376 = vmatprep.subr.mxu0 0.0
    %377 = vmatpush1.msra.mxu0 0.0
    %378 = vmatprep.subr.mxu0 0.0
    %379 = vmatpush1.msra.mxu0 0.0
    %380 = vmatprep.subr.mxu0 0.0
    %381 = vmatpush1.msra.mxu0 0.0
    %382 = vmatprep.subr.mxu0 0.0
    %383 = vmatpush1.msra.mxu0 0.0
    %384 = vmatprep.subr.mxu0 0.0
    %385 = vmatpush1.msra.mxu0 0.0
    %386 = vmatprep.subr.mxu0 0.0
    %387 = vmatpush1.msra.mxu0 0.0
    %388 = vmatprep.subr.mxu0 0.0
    %389 = vmatpush1.msra.mxu0 0.0
    %390 = vmatprep.subr.mxu0 0.0
    %391 = vmatpush1.msra.mxu0 0.0
    %392 = vmatprep.subr.mxu0 0.0
    %393 = vmatpush1.msra.mxu0 0.0
    %394 = vmatprep.subr.mxu0 0.0
    %395 = vmatpush1.msra.mxu0 0.0
    %396 = vmatprep.subr.mxu0 0.0
    %397 = vmatpush1.msra.mxu0 0.0
    %398 = vmatprep.subr.mxu0 0.0
    %399 = vmatpush1.msra.mxu0 0.0
    %400 = vmatprep.subr.mxu0 0.0
    %401 = vmatpush1.msra.mxu0 0.0
    %402 = vmatprep.subr.mxu0 0.0
    %403 = vmatpush1.msra.mxu0 0.0
    %404 = vmatprep.subr.mxu0 0.0
    %405 = vmatpush1.msra.mxu0 0.0
    %406 = vmatprep.subr.mxu0 0.0
    %407 = vmatpush1.msra.mxu0 0.0
    %408 = vmatprep.subr.mxu0 0.0
    %409 = vmatpush1.msra.mxu0 0.0
    %410 = vmatprep.subr.mxu0 0.0
    %411 = vmatpush1.msra.mxu0 0.0
    %412 = vmatprep.mubr.f32.mxu0 0.0
    %413 = vmatmul.mubr.f32.gmra.mrb[0].mxu0 %v346
    %v414 = vpop.f32.mrb[0].mxu0
    %v415 = vadd.f32 0.0, %v414
    %v416 = vpop.f32.mrb[0].mxu0
    %417 = vdwg.mxu0
    %418 = vmatprep.subr.mxu0 0.0
    %419 = vmatpush1.msra.mxu0 %v227
    %420 = vmatprep.subr.mxu0 0.0
    %421 = vmatpush1.msra.mxu0 %v228
    %422 = vmatprep.subr.mxu0 0.0
    %423 = vmatpush1.msra.mxu0 %v229
    %424 = vmatprep.subr.mxu0 0.0
    %425 = vmatpush1.msra.mxu0 %v230
    %426 = vmatprep.subr.mxu0 0.0
    %427 = vmatpush1.msra.mxu0 0.0
    %428 = vmatprep.subr.mxu0 0.0
    %429 = vmatpush1.msra.mxu0 0.0
    %430 = vmatprep.subr.mxu0 0.0
    %431 = vmatpush1.msra.mxu0 0.0
    %432 = vmatprep.subr.mxu0 0.0
    %433 = vmatpush1.msra.mxu0 0.0
    %434 = vmatprep.subr.mxu0 0.0
    %435 = vmatpush1.msra.mxu0 0.0
    %436 = vmatprep.subr.mxu0 0.0
    %437 = vmatpush1.msra.mxu0 0.0
    %438 = vmatprep.subr.mxu0 0.0
    %439 = vmatpush1.msra.mxu0 0.0
    %440 = vmatprep.subr.mxu0 0.0
    %441 = vmatpush1.msra.mxu0 0.0
    %442 = vmatprep.subr.mxu0 0.0
    %443 = vmatpush1.msra.mxu0 0.0
    %444 = vmatprep.subr.mxu0 0.0
    %445 = vmatpush1.msra.mxu0 0.0
    %446 = vmatprep.subr.mxu0 0.0
    %447 = vmatpush1.msra.mxu0 0.0
    %448 = vmatprep.subr.mxu0 0.0
    %449 = vmatpush1.msra.mxu0 0.0
    %450 = vmatprep.subr.mxu0 0.0
    %451 = vmatpush1.msra.mxu0 0.0
    %452 = vmatprep.subr.mxu0 0.0
    %453 = vmatpush1.msra.mxu0 0.0
    %454 = vmatprep.subr.mxu0 0.0
    %455 = vmatpush1.msra.mxu0 0.0
    %456 = vmatprep.subr.mxu0 0.0
    %457 = vmatpush1.msra.mxu0 0.0
    %458 = vmatprep.subr.mxu0 0.0
    %459 = vmatpush1.msra.mxu0 0.0
    %460 = vmatprep.subr.mxu0 0.0
    %461 = vmatpush1.msra.mxu0 0.0
    %462 = vmatprep.subr.mxu0 0.0
    %463 = vmatpush1.msra.mxu0 0.0
    %464 = vmatprep.subr.mxu0 0.0
    %465 = vmatpush1.msra.mxu0 0.0
    %466 = vmatprep.subr.mxu0 0.0
    %467 = vmatpush1.msra.mxu0 0.0
    %468 = vmatprep.subr.mxu0 0.0
    %469 = vmatpush1.msra.mxu0 0.0
    %470 = vmatprep.subr.mxu0 0.0
    %471 = vmatpush1.msra.mxu0 0.0
    %472 = vmatprep.subr.mxu0 0.0
    %473 = vmatpush1.msra.mxu0 0.0
    %474 = vmatprep.subr.mxu0 0.0
    %475 = vmatpush1.msra.mxu0 0.0
    %476 = vmatprep.subr.mxu0 0.0
    %477 = vmatpush1.msra.mxu0 0.0
    %478 = vmatprep.subr.mxu0 0.0
    %479 = vmatpush1.msra.mxu0 0.0
    %480 = vmatprep.subr.mxu0 0.0
    %481 = vmatpush1.msra.mxu0 0.0
    %482 = vmatprep.mubr.f32.mxu0 0.0
    %483 = vmatmul.mubr.f32.gmra.mrb[0].mxu0 %v234
    %v484 = vpop.f32.mrb[0].mxu0
    %v485 = vadd.f32 %v415, %v484
    %v486 = vpop.f32.mrb[0].mxu0
    %487 = vdwg.mxu0
    %488 = vmatprep.subr.mxu0 0.0
    %489 = vmatpush1.msra.mxu0 %v124
    %490 = vmatprep.subr.mxu0 0.0
    %491 = vmatpush1.msra.mxu0 %v125
    %492 = vmatprep.subr.mxu0 0.0
    %493 = vmatpush1.msra.mxu0 %v126
    %494 = vmatprep.subr.mxu0 0.0
    %495 = vmatpush1.msra.mxu0 %v127
    %496 = vmatprep.subr.mxu0 0.0
    %497 = vmatpush1.msra.mxu0 0.0
    %498 = vmatprep.subr.mxu0 0.0
    %499 = vmatpush1.msra.mxu0 0.0
    %500 = vmatprep.subr.mxu0 0.0
    %501 = vmatpush1.msra.mxu0 0.0
    %502 = vmatprep.subr.mxu0 0.0
    %503 = vmatpush1.msra.mxu0 0.0
    %504 = vmatprep.subr.mxu0 0.0
    %505 = vmatpush1.msra.mxu0 0.0
    %506 = vmatprep.subr.mxu0 0.0
    %507 = vmatpush1.msra.mxu0 0.0
    %508 = vmatprep.subr.mxu0 0.0
    %509 = vmatpush1.msra.mxu0 0.0
    %510 = vmatprep.subr.mxu0 0.0
    %511 = vmatpush1.msra.mxu0 0.0
    %512 = vmatprep.subr.mxu0 0.0
    %513 = vmatpush1.msra.mxu0 0.0
    %514 = vmatprep.subr.mxu0 0.0
    %515 = vmatpush1.msra.mxu0 0.0
    %516 = vmatprep.subr.mxu0 0.0
    %517 = vmatpush1.msra.mxu0 0.0
    %518 = vmatprep.subr.mxu0 0.0
    %519 = vmatpush1.msra.mxu0 0.0
    %520 = vmatprep.subr.mxu0 0.0
    %521 = vmatpush1.msra.mxu0 0.0
    %522 = vmatprep.subr.mxu0 0.0
    %523 = vmatpush1.msra.mxu0 0.0
    %524 = vmatprep.subr.mxu0 0.0
    %525 = vmatpush1.msra.mxu0 0.0
    %526 = vmatprep.subr.mxu0 0.0
    %527 = vmatpush1.msra.mxu0 0.0
    %528 = vmatprep.subr.mxu0 0.0
    %529 = vmatpush1.msra.mxu0 0.0
    %530 = vmatprep.subr.mxu0 0.0
    %531 = vmatpush1.msra.mxu0 0.0
    %532 = vmatprep.subr.mxu0 0.0
    %533 = vmatpush1.msra.mxu0 0.0
    %534 = vmatprep.subr.mxu0 0.0
    %535 = vmatpush1.msra.mxu0 0.0
    %536 = vmatprep.subr.mxu0 0.0
    %537 = vmatpush1.msra.mxu0 0.0
    %538 = vmatprep.subr.mxu0 0.0
    %539 = vmatpush1.msra.mxu0 0.0
    %540 = vmatprep.subr.mxu0 0.0
    %541 = vmatpush1.msra.mxu0 0.0
    %542 = vmatprep.subr.mxu0 0.0
    %543 = vmatpush1.msra.mxu0 0.0
    %544 = vmatprep.subr.mxu0 0.0
    %545 = vmatpush1.msra.mxu0 0.0
    %546 = vmatprep.subr.mxu0 0.0
    %547 = vmatpush1.msra.mxu0 0.0
    %548 = vmatprep.subr.mxu0 0.0
    %549 = vmatpush1.msra.mxu0 0.0
    %550 = vmatprep.subr.mxu0 0.0
    %551 = vmatpush1.msra.mxu0 0.0
    %552 = vmatprep.mubr.f32.mxu0 0.0
    %553 = vmatmul.mubr.f32.gmra.mrb[0].mxu0 %v346
    %v554 = vpop.f32.mrb[0].mxu0
    %v555 = vadd.f32 0.0, %v554
    %v556 = vpop.f32.mrb[0].mxu0
    %557 = vdwg.mxu0
    %v559 = vrot.slane %v555, 4
    %v561 = vadd.f32 %v116, %v559
    %v562 = vxor.u32 %v561, 2147483648
    %v563 = vmul.f32 %v562, 1.442695
    %v564 = vpow.pop %v563
    %v565 = vadd.f32 %v564, 1.0
    %v566 = vrcp.pop %v565
    %v567 = vmul.f32 1.0, %v566
    %v568 = vtanh.pop %v561
    %v570 = vrot.slane %v330, 6
    %v572 = vmul.f32 %v567, %v570
    %574 = vrot.lane.b32.xlu0 %v568, 64
    %v575 = vpop.permute.xlu0 %574
    %v577 = vmul.f32 %v567, %v575
    %579 = vrot.lane.b32.xlu0 %v577, 32
    %v580 = vpop.permute.xlu0 %579
    %v582 = vadd.f32 %v572, %v580
    %v583 = vtanh.pop %v582
    %585 = vrot.lane.b32.xlu0 %v583, 64
    %v586 = vpop.permute.xlu0 %585
    %v588 = vmul.f32 %v567, %v586
    %s589 = scalar_lea.vmem %s4, 64
    %v590 = vld [vmem:[%s589] sm:$0xff]
    %v591 = vld [vmem:[%s589 + $0x8] sm:$0xff]
    %v592 = vld [vmem:[%s589 + $0x10] sm:$0xff]
    %v593 = vld [vmem:[%s589 + $0x18] sm:$0xff]
    %v595 = vrot.slane %v588, 4
    %596 = vrot.lane.b32.xlu0 %v595, 32
    %v597 = vpop.permute.xlu0 %596
    %v598 = vsel %vm128, %v597, 0
    %600 = vmatprep.subr.mxu0 0.0
    %601 = vmatpush1.msra.mxu0 %v590
    %602 = vmatprep.subr.mxu0 0.0
    %603 = vmatpush1.msra.mxu0 %v591
    %604 = vmatprep.subr.mxu0 0.0
    %605 = vmatpush1.msra.mxu0 %v592
    %606 = vmatprep.subr.mxu0 0.0
    %607 = vmatpush1.msra.mxu0 %v593
    %608 = vmatprep.subr.mxu0 0.0
    %609 = vmatpush1.msra.mxu0 0.0
    %610 = vmatprep.subr.mxu0 0.0
    %611 = vmatpush1.msra.mxu0 0.0
    %612 = vmatprep.subr.mxu0 0.0
    %613 = vmatpush1.msra.mxu0 0.0
    %614 = vmatprep.subr.mxu0 0.0
    %615 = vmatpush1.msra.mxu0 0.0
    %616 = vmatprep.subr.mxu0 0.0
    %617 = vmatpush1.msra.mxu0 0.0
    %618 = vmatprep.subr.mxu0 0.0
    %619 = vmatpush1.msra.mxu0 0.0
    %620 = vmatprep.subr.mxu0 0.0
    %621 = vmatpush1.msra.mxu0 0.0
    %622 = vmatprep.subr.mxu0 0.0
    %623 = vmatpush1.msra.mxu0 0.0
    %624 = vmatprep.subr.mxu0 0.0
    %625 = vmatpush1.msra.mxu0 0.0
    %626 = vmatprep.subr.mxu0 0.0
    %627 = vmatpush1.msra.mxu0 0.0
    %628 = vmatprep.subr.mxu0 0.0
    %629 = vmatpush1.msra.mxu0 0.0
    %630 = vmatprep.subr.mxu0 0.0
    %631 = vmatpush1.msra.mxu0 0.0
    %632 = vmatprep.subr.mxu0 0.0
    %633 = vmatpush1.msra.mxu0 0.0
    %634 = vmatprep.subr.mxu0 0.0
    %635 = vmatpush1.msra.mxu0 0.0
    %636 = vmatprep.subr.mxu0 0.0
    %637 = vmatpush1.msra.mxu0 0.0
    %638 = vmatprep.subr.mxu0 0.0
    %639 = vmatpush1.msra.mxu0 0.0
    %640 = vmatprep.subr.mxu0 0.0
    %641 = vmatpush1.msra.mxu0 0.0
    %642 = vmatprep.subr.mxu0 0.0
    %643 = vmatpush1.msra.mxu0 0.0
    %644 = vmatprep.subr.mxu0 0.0
    %645 = vmatpush1.msra.mxu0 0.0
    %646 = vmatprep.subr.mxu0 0.0
    %647 = vmatpush1.msra.mxu0 0.0
    %648 = vmatprep.subr.mxu0 0.0
    %649 = vmatpush1.msra.mxu0 0.0
    %650 = vmatprep.subr.mxu0 0.0
    %651 = vmatpush1.msra.mxu0 0.0
    %652 = vmatprep.subr.mxu0 0.0
    %653 = vmatpush1.msra.mxu0 0.0
    %654 = vmatprep.subr.mxu0 0.0
    %655 = vmatpush1.msra.mxu0 0.0
    %656 = vmatprep.subr.mxu0 0.0
    %657 = vmatpush1.msra.mxu0 0.0
    %658 = vmatprep.subr.mxu0 0.0
    %659 = vmatpush1.msra.mxu0 0.0
    %660 = vmatprep.subr.mxu0 0.0
    %661 = vmatpush1.msra.mxu0 0.0
    %662 = vmatprep.subr.mxu0 0.0
    %663 = vmatpush1.msra.mxu0 0.0
    %664 = vmatprep.mubr.f32.mxu0 0.0
    %665 = vmatmul.mubr.f32.gmra.mrb[0].mxu0 %v598
    %v666 = vpop.f32.mrb[0].mxu0
    %v667 = vadd.f32 0.0, %v666
    %v668 = vpop.f32.mrb[0].mxu0
    %669 = vdwg.mxu0
    %v670 = vadd.f32 %v485, %v667
    %671 = vmatprep.subr.mxu0 0.0
    %672 = vmatpush1.msra.mxu0 %v124
    %673 = vmatprep.subr.mxu0 0.0
    %674 = vmatpush1.msra.mxu0 %v125
    %675 = vmatprep.subr.mxu0 0.0
    %676 = vmatpush1.msra.mxu0 %v126
    %677 = vmatprep.subr.mxu0 0.0
    %678 = vmatpush1.msra.mxu0 %v127
    %679 = vmatprep.subr.mxu0 0.0
    %680 = vmatpush1.msra.mxu0 0.0
    %681 = vmatprep.subr.mxu0 0.0
    %682 = vmatpush1.msra.mxu0 0.0
    %683 = vmatprep.subr.mxu0 0.0
    %684 = vmatpush1.msra.mxu0 0.0
    %685 = vmatprep.subr.mxu0 0.0
    %686 = vmatpush1.msra.mxu0 0.0
    %687 = vmatprep.subr.mxu0 0.0
    %688 = vmatpush1.msra.mxu0 0.0
    %689 = vmatprep.subr.mxu0 0.0
    %690 = vmatpush1.msra.mxu0 0.0
    %691 = vmatprep.subr.mxu0 0.0
    %692 = vmatpush1.msra.mxu0 0.0
    %693 = vmatprep.subr.mxu0 0.0
    %694 = vmatpush1.msra.mxu0 0.0
    %695 = vmatprep.subr.mxu0 0.0
    %696 = vmatpush1.msra.mxu0 0.0
    %697 = vmatprep.subr.mxu0 0.0
    %698 = vmatpush1.msra.mxu0 0.0
    %699 = vmatprep.subr.mxu0 0.0
    %700 = vmatpush1.msra.mxu0 0.0
    %701 = vmatprep.subr.mxu0 0.0
    %702 = vmatpush1.msra.mxu0 0.0
    %703 = vmatprep.subr.mxu0 0.0
    %704 = vmatpush1.msra.mxu0 0.0
    %705 = vmatprep.subr.mxu0 0.0
    %706 = vmatpush1.msra.mxu0 0.0
    %707 = vmatprep.subr.mxu0 0.0
    %708 = vmatpush1.msra.mxu0 0.0
    %709 = vmatprep.subr.mxu0 0.0
    %710 = vmatpush1.msra.mxu0 0.0
    %711 = vmatprep.subr.mxu0 0.0
    %712 = vmatpush1.msra.mxu0 0.0
    %713 = vmatprep.subr.mxu0 0.0
    %714 = vmatpush1.msra.mxu0 0.0
    %715 = vmatprep.subr.mxu0 0.0
    %716 = vmatpush1.msra.mxu0 0.0
    %717 = vmatprep.subr.mxu0 0.0
    %718 = vmatpush1.msra.mxu0 0.0
    %719 = vmatprep.subr.mxu0 0.0
    %720 = vmatpush1.msra.mxu0 0.0
    %721 = vmatprep.subr.mxu0 0.0
    %722 = vmatpush1.msra.mxu0 0.0
    %723 = vmatprep.subr.mxu0 0.0
    %724 = vmatpush1.msra.mxu0 0.0
    %725 = vmatprep.subr.mxu0 0.0
    %726 = vmatpush1.msra.mxu0 0.0
    %727 = vmatprep.subr.mxu0 0.0
    %728 = vmatpush1.msra.mxu0 0.0
    %729 = vmatprep.subr.mxu0 0.0
    %730 = vmatpush1.msra.mxu0 0.0
    %731 = vmatprep.subr.mxu0 0.0
    %732 = vmatpush1.msra.mxu0 0.0
    %733 = vmatprep.subr.mxu0 0.0
    %734 = vmatpush1.msra.mxu0 0.0
    %735 = vmatprep.mubr.f32.mxu0 0.0
    %736 = vmatmul.mubr.f32.gmra.mrb[0].mxu0 %v598
    %v737 = vpop.f32.mrb[0].mxu0
    %v738 = vadd.f32 0.0, %v737
    %v739 = vpop.f32.mrb[0].mxu0
    %740 = vdwg.mxu0
    %v742 = vrot.slane %v738, 2
    %v744 = vadd.f32 %v116, %v742
    %v745 = vxor.u32 %v744, 2147483648
    %v746 = vmul.f32 %v745, 1.442695
    %v747 = vpow.pop %v746
    %v748 = vadd.f32 %v747, 1.0
    %v749 = vrcp.pop %v748
    %v750 = vmul.f32 1.0, %v749
    %v751 = vtanh.pop %v744
    %v753 = vrot.slane %v582, 6
    %v755 = vmul.f32 %v750, %v753
    %757 = vrot.lane.b32.xlu0 %v751, 64
    %v758 = vpop.permute.xlu0 %757
    %v760 = vmul.f32 %v750, %v758
    %762 = vrot.lane.b32.xlu0 %v760, 32
    %v763 = vpop.permute.xlu0 %762
    %v765 = vadd.f32 %v755, %v763
    %v766 = vtanh.pop %v765
    %768 = vrot.lane.b32.xlu0 %v766, 64
    %v769 = vpop.permute.xlu0 %768
    %v771 = vmul.f32 %v750, %v769
    %s772 = scalar_lea.vmem %s4, 96
    %v773 = vld [vmem:[%s772] sm:$0xff]
    %v774 = vld [vmem:[%s772 + $0x8] sm:$0xff]
    %v775 = vld [vmem:[%s772 + $0x10] sm:$0xff]
    %v776 = vld [vmem:[%s772 + $0x18] sm:$0xff]
    %v778 = vrot.slane %v771, 6
    %779 = vrot.lane.b32.xlu0 %v778, 32
    %v780 = vpop.permute.xlu0 %779
    %v781 = vsel %vm128, %v780, 0
    %783 = vmatprep.subr.mxu0 0.0
    %784 = vmatpush1.msra.mxu0 %v773
    %785 = vmatprep.subr.mxu0 0.0
    %786 = vmatpush1.msra.mxu0 %v774
    %787 = vmatprep.subr.mxu0 0.0
    %788 = vmatpush1.msra.mxu0 %v775
    %789 = vmatprep.subr.mxu0 0.0
    %790 = vmatpush1.msra.mxu0 %v776
    %791 = vmatprep.subr.mxu0 0.0
    %792 = vmatpush1.msra.mxu0 0.0
    %793 = vmatprep.subr.mxu0 0.0
    %794 = vmatpush1.msra.mxu0 0.0
    %795 = vmatprep.subr.mxu0 0.0
    %796 = vmatpush1.msra.mxu0 0.0
    %797 = vmatprep.subr.mxu0 0.0
    %798 = vmatpush1.msra.mxu0 0.0
    %799 = vmatprep.subr.mxu0 0.0
    %800 = vmatpush1.msra.mxu0 0.0
    %801 = vmatprep.subr.mxu0 0.0
    %802 = vmatpush1.msra.mxu0 0.0
    %803 = vmatprep.subr.mxu0 0.0
    %804 = vmatpush1.msra.mxu0 0.0
    %805 = vmatprep.subr.mxu0 0.0
    %806 = vmatpush1.msra.mxu0 0.0
    %807 = vmatprep.subr.mxu0 0.0
    %808 = vmatpush1.msra.mxu0 0.0
    %809 = vmatprep.subr.mxu0 0.0
    %810 = vmatpush1.msra.mxu0 0.0
    %811 = vmatprep.subr.mxu0 0.0
    %812 = vmatpush1.msra.mxu0 0.0
    %813 = vmatprep.subr.mxu0 0.0
    %814 = vmatpush1.msra.mxu0 0.0
    %815 = vmatprep.subr.mxu0 0.0
    %816 = vmatpush1.msra.mxu0 0.0
    %817 = vmatprep.subr.mxu0 0.0
    %818 = vmatpush1.msra.mxu0 0.0
    %819 = vmatprep.subr.mxu0 0.0
    %820 = vmatpush1.msra.mxu0 0.0
    %821 = vmatprep.subr.mxu0 0.0
    %822 = vmatpush1.msra.mxu0 0.0
    %823 = vmatprep.subr.mxu0 0.0
    %824 = vmatpush1.msra.mxu0 0.0
    %825 = vmatprep.subr.mxu0 0.0
    %826 = vmatpush1.msra.mxu0 0.0
    %827 = vmatprep.subr.mxu0 0.0
    %828 = vmatpush1.msra.mxu0 0.0
    %829 = vmatprep.subr.mxu0 0.0
    %830 = vmatpush1.msra.mxu0 0.0
    %831 = vmatprep.subr.mxu0 0.0
    %832 = vmatpush1.msra.mxu0 0.0
    %833 = vmatprep.subr.mxu0 0.0
    %834 = vmatpush1.msra.mxu0 0.0
    %835 = vmatprep.subr.mxu0 0.0
    %836 = vmatpush1.msra.mxu0 0.0
    %837 = vmatprep.subr.mxu0 0.0
    %838 = vmatpush1.msra.mxu0 0.0
    %839 = vmatprep.subr.mxu0 0.0
    %840 = vmatpush1.msra.mxu0 0.0
    %841 = vmatprep.subr.mxu0 0.0
    %842 = vmatpush1.msra.mxu0 0.0
    %843 = vmatprep.subr.mxu0 0.0
    %844 = vmatpush1.msra.mxu0 0.0
    %845 = vmatprep.subr.mxu0 0.0
    %846 = vmatpush1.msra.mxu0 0.0
    %847 = vmatprep.mubr.f32.mxu0 0.0
    %848 = vmatmul.mubr.f32.gmra.mrb[0].mxu0 %v781
    %v849 = vpop.f32.mrb[0].mxu0
    %v850 = vadd.f32 0.0, %v849
    %v851 = vpop.f32.mrb[0].mxu0
    %852 = vdwg.mxu0
    %v853 = vadd.f32 %v670, %v850
    %854 = vmatprep.subr.mxu0 0.0
    %855 = vmatpush1.msra.mxu0 %v124
    %856 = vmatprep.subr.mxu0 0.0
    %857 = vmatpush1.msra.mxu0 %v125
    %858 = vmatprep.subr.mxu0 0.0
    %859 = vmatpush1.msra.mxu0 %v126
    %860 = vmatprep.subr.mxu0 0.0
    %861 = vmatpush1.msra.mxu0 %v127
    %862 = vmatprep.subr.mxu0 0.0
    %863 = vmatpush1.msra.mxu0 0.0
    %864 = vmatprep.subr.mxu0 0.0
    %865 = vmatpush1.msra.mxu0 0.0
    %866 = vmatprep.subr.mxu0 0.0
    %867 = vmatpush1.msra.mxu0 0.0
    %868 = vmatprep.subr.mxu0 0.0
    %869 = vmatpush1.msra.mxu0 0.0
    %870 = vmatprep.subr.mxu0 0.0
    %871 = vmatpush1.msra.mxu0 0.0
    %872 = vmatprep.subr.mxu0 0.0
    %873 = vmatpush1.msra.mxu0 0.0
    %874 = vmatprep.subr.mxu0 0.0
    %875 = vmatpush1.msra.mxu0 0.0
    %876 = vmatprep.subr.mxu0 0.0
    %877 = vmatpush1.msra.mxu0 0.0
    %878 = vmatprep.subr.mxu0 0.0
    %879 = vmatpush1.msra.mxu0 0.0
    %880 = vmatprep.subr.mxu0 0.0
    %881 = vmatpush1.msra.mxu0 0.0
    %882 = vmatprep.subr.mxu0 0.0
    %883 = vmatpush1.msra.mxu0 0.0
    %884 = vmatprep.subr.mxu0 0.0
    %885 = vmatpush1.msra.mxu0 0.0
    %886 = vmatprep.subr.mxu0 0.0
    %887 = vmatpush1.msra.mxu0 0.0
    %888 = vmatprep.subr.mxu0 0.0
    %889 = vmatpush1.msra.mxu0 0.0
    %890 = vmatprep.subr.mxu0 0.0
    %891 = vmatpush1.msra.mxu0 0.0
    %892 = vmatprep.subr.mxu0 0.0
    %893 = vmatpush1.msra.mxu0 0.0
    %894 = vmatprep.subr.mxu0 0.0
    %895 = vmatpush1.msra.mxu0 0.0
    %896 = vmatprep.subr.mxu0 0.0
    %897 = vmatpush1.msra.mxu0 0.0
    %898 = vmatprep.subr.mxu0 0.0
    %899 = vmatpush1.msra.mxu0 0.0
    %900 = vmatprep.subr.mxu0 0.0
    %901 = vmatpush1.msra.mxu0 0.0
    %902 = vmatprep.subr.mxu0 0.0
    %903 = vmatpush1.msra.mxu0 0.0
    %904 = vmatprep.subr.mxu0 0.0
    %905 = vmatpush1.msra.mxu0 0.0
    %906 = vmatprep.subr.mxu0 0.0
    %907 = vmatpush1.msra.mxu0 0.0
    %908 = vmatprep.subr.mxu0 0.0
    %909 = vmatpush1.msra.mxu0 0.0
    %910 = vmatprep.subr.mxu0 0.0
    %911 = vmatpush1.msra.mxu0 0.0
    %912 = vmatprep.subr.mxu0 0.0
    %913 = vmatpush1.msra.mxu0 0.0
    %914 = vmatprep.subr.mxu0 0.0
    %915 = vmatpush1.msra.mxu0 0.0
    %916 = vmatprep.subr.mxu0 0.0
    %917 = vmatpush1.msra.mxu0 0.0
    %918 = vmatprep.mubr.f32.mxu0 0.0
    %919 = vmatmul.mubr.f32.gmra.mrb[0].mxu0 %v781
    %v920 = vpop.f32.mrb[0].mxu0
    %v921 = vadd.f32 0.0, %v920
    %v922 = vpop.f32.mrb[0].mxu0
    %923 = vdwg.mxu0
    %v924 = vadd.f32 %v121, %v921
    %v925 = vxor.u32 %v924, 2147483648
    %v926 = vmul.f32 %v925, 1.442695
    %v927 = vpow.pop %v926
    %v928 = vadd.f32 %v927, 1.0
    %v929 = vrcp.pop %v928
    %v930 = vmul.f32 1.0, %v929
    %v931 = vtanh.pop %v924
    %v933 = vrot.slane %v765, 6
    %v935 = vmul.f32 %v930, %v933
    %937 = vrot.lane.b32.xlu0 %v931, 64
    %v938 = vpop.permute.xlu0 %937
    %v940 = vmul.f32 %v930, %v938
    %942 = vrot.lane.b32.xlu0 %v940, 32
    %v943 = vpop.permute.xlu0 %942
    %v945 = vadd.f32 %v935, %v943
    %v946 = vtanh.pop %v945
    %948 = vrot.lane.b32.xlu0 %v946, 64
    %v949 = vpop.permute.xlu0 %948
    %v951 = vmul.f32 %v930, %v949
    %s952 = scalar_lea.vmem %s4, 128
    %v953 = vld [vmem:[%s952] sm:$0xff]
    %v954 = vld [vmem:[%s952 + $0x8] sm:$0xff]
    %v955 = vld [vmem:[%s952 + $0x10] sm:$0xff]
    %v956 = vld [vmem:[%s952 + $0x18] sm:$0xff]
    %958 = vrot.lane.b32.xlu0 %v951, 32
    %v959 = vpop.permute.xlu0 %958
    %v960 = vsel %vm128, %v959, 0
    %962 = vmatprep.subr.mxu0 0.0
    %963 = vmatpush1.msra.mxu0 %v953
    %964 = vmatprep.subr.mxu0 0.0
    %965 = vmatpush1.msra.mxu0 %v954
    %966 = vmatprep.subr.mxu0 0.0
    %967 = vmatpush1.msra.mxu0 %v955
    %968 = vmatprep.subr.mxu0 0.0
    %969 = vmatpush1.msra.mxu0 %v956
    %970 = vmatprep.subr.mxu0 0.0
    %971 = vmatpush1.msra.mxu0 0.0
    %972 = vmatprep.subr.mxu0 0.0
    %973 = vmatpush1.msra.mxu0 0.0
    %974 = vmatprep.subr.mxu0 0.0
    %975 = vmatpush1.msra.mxu0 0.0
    %976 = vmatprep.subr.mxu0 0.0
    %977 = vmatpush1.msra.mxu0 0.0
    %978 = vmatprep.subr.mxu0 0.0
    %979 = vmatpush1.msra.mxu0 0.0
    %980 = vmatprep.subr.mxu0 0.0
    %981 = vmatpush1.msra.mxu0 0.0
    %982 = vmatprep.subr.mxu0 0.0
    %983 = vmatpush1.msra.mxu0 0.0
    %984 = vmatprep.subr.mxu0 0.0
    %985 = vmatpush1.msra.mxu0 0.0
    %986 = vmatprep.subr.mxu0 0.0
    %987 = vmatpush1.msra.mxu0 0.0
    %988 = vmatprep.subr.mxu0 0.0
    %989 = vmatpush1.msra.mxu0 0.0
    %990 = vmatprep.subr.mxu0 0.0
    %991 = vmatpush1.msra.mxu0 0.0
    %992 = vmatprep.subr.mxu0 0.0
    %993 = vmatpush1.msra.mxu0 0.0
    %994 = vmatprep.subr.mxu0 0.0
    %995 = vmatpush1.msra.mxu0 0.0
    %996 = vmatprep.subr.mxu0 0.0
    %997 = vmatpush1.msra.mxu0 0.0
    %998 = vmatprep.subr.mxu0 0.0
    %999 = vmatpush1.msra.mxu0 0.0
    %1000 = vmatprep.subr.mxu0 0.0
    %1001 = vmatpush1.msra.mxu0 0.0
    %1002 = vmatprep.subr.mxu0 0.0
    %1003 = vmatpush1.msra.mxu0 0.0
    %1004 = vmatprep.subr.mxu0 0.0
    %1005 = vmatpush1.msra.mxu0 0.0
    %1006 = vmatprep.subr.mxu0 0.0
    %1007 = vmatpush1.msra.mxu0 0.0
    %1008 = vmatprep.subr.mxu0 0.0
    %1009 = vmatpush1.msra.mxu0 0.0
    %1010 = vmatprep.subr.mxu0 0.0
    %1011 = vmatpush1.msra.mxu0 0.0
    %1012 = vmatprep.subr.mxu0 0.0
    %1013 = vmatpush1.msra.mxu0 0.0
    %1014 = vmatprep.subr.mxu0 0.0
    %1015 = vmatpush1.msra.mxu0 0.0
    %1016 = vmatprep.subr.mxu0 0.0
    %1017 = vmatpush1.msra.mxu0 0.0
    %1018 = vmatprep.subr.mxu0 0.0
    %1019 = vmatpush1.msra.mxu0 0.0
    %1020 = vmatprep.subr.mxu0 0.0
    %1021 = vmatpush1.msra.mxu0 0.0
    %1022 = vmatprep.subr.mxu0 0.0
    %1023 = vmatpush1.msra.mxu0 0.0
    %1024 = vmatprep.subr.mxu0 0.0
    %1025 = vmatpush1.msra.mxu0 0.0
    %1026 = vmatprep.mubr.f32.mxu0 0.0
    %1027 = vmatmul.mubr.f32.gmra.mrb[0].mxu0 %v960
    %v1028 = vpop.f32.mrb[0].mxu0
    %v1029 = vadd.f32 0.0, %v1028
    %v1030 = vpop.f32.mrb[0].mxu0
    %1031 = vdwg.mxu0
    %v1032 = vadd.f32 %v853, %v1029
    %1033 = vmatprep.subr.mxu0 0.0
    %1034 = vmatpush1.msra.mxu0 %v124
    %1035 = vmatprep.subr.mxu0 0.0
    %1036 = vmatpush1.msra.mxu0 %v125
    %1037 = vmatprep.subr.mxu0 0.0
    %1038 = vmatpush1.msra.mxu0 %v126
    %1039 = vmatprep.subr.mxu0 0.0
    %1040 = vmatpush1.msra.mxu0 %v127
    %1041 = vmatprep.subr.mxu0 0.0
    %1042 = vmatpush1.msra.mxu0 0.0
    %1043 = vmatprep.subr.mxu0 0.0
    %1044 = vmatpush1.msra.mxu0 0.0
    %1045 = vmatprep.subr.mxu0 0.0
    %1046 = vmatpush1.msra.mxu0 0.0
    %1047 = vmatprep.subr.mxu0 0.0
    %1048 = vmatpush1.msra.mxu0 0.0
    %1049 = vmatprep.subr.mxu0 0.0
    %1050 = vmatpush1.msra.mxu0 0.0
    %1051 = vmatprep.subr.mxu0 0.0
    %1052 = vmatpush1.msra.mxu0 0.0
    %1053 = vmatprep.subr.mxu0 0.0
    %1054 = vmatpush1.msra.mxu0 0.0
    %1055 = vmatprep.subr.mxu0 0.0
    %1056 = vmatpush1.msra.mxu0 0.0
    %1057 = vmatprep.subr.mxu0 0.0
    %1058 = vmatpush1.msra.mxu0 0.0
    %1059 = vmatprep.subr.mxu0 0.0
    %1060 = vmatpush1.msra.mxu0 0.0
    %1061 = vmatprep.subr.mxu0 0.0
    %1062 = vmatpush1.msra.mxu0 0.0
    %1063 = vmatprep.subr.mxu0 0.0
    %1064 = vmatpush1.msra.mxu0 0.0
    %1065 = vmatprep.subr.mxu0 0.0
    %1066 = vmatpush1.msra.mxu0 0.0
    %1067 = vmatprep.subr.mxu0 0.0
    %1068 = vmatpush1.msra.mxu0 0.0
    %1069 = vmatprep.subr.mxu0 0.0
    %1070 = vmatpush1.msra.mxu0 0.0
    %1071 = vmatprep.subr.mxu0 0.0
    %1072 = vmatpush1.msra.mxu0 0.0
    %1073 = vmatprep.subr.mxu0 0.0
    %1074 = vmatpush1.msra.mxu0 0.0
    %1075 = vmatprep.subr.mxu0 0.0
    %1076 = vmatpush1.msra.mxu0 0.0
    %1077 = vmatprep.subr.mxu0 0.0
    %1078 = vmatpush1.msra.mxu0 0.0
    %1079 = vmatprep.subr.mxu0 0.0
    %1080 = vmatpush1.msra.mxu0 0.0
    %1081 = vmatprep.subr.mxu0 0.0
    %1082 = vmatpush1.msra.mxu0 0.0
    %1083 = vmatprep.subr.mxu0 0.0
    %1084 = vmatpush1.msra.mxu0 0.0
    %1085 = vmatprep.subr.mxu0 0.0
    %1086 = vmatpush1.msra.mxu0 0.0
    %1087 = vmatprep.subr.mxu0 0.0
    %1088 = vmatpush1.msra.mxu0 0.0
    %1089 = vmatprep.subr.mxu0 0.0
    %1090 = vmatpush1.msra.mxu0 0.0
    %1091 = vmatprep.subr.mxu0 0.0
    %1092 = vmatpush1.msra.mxu0 0.0
    %1093 = vmatprep.subr.mxu0 0.0
    %1094 = vmatpush1.msra.mxu0 0.0
    %1095 = vmatprep.subr.mxu0 0.0
    %1096 = vmatpush1.msra.mxu0 0.0
    %1097 = vmatprep.mubr.f32.mxu0 0.0
    %1098 = vmatmul.mubr.f32.gmra.mrb[0].mxu0 %v960
    %v1099 = vpop.f32.mrb[0].mxu0
    %v1100 = vadd.f32 0.0, %v1099
    %v1101 = vpop.f32.mrb[0].mxu0
    %1102 = vdwg.mxu0
    %v1104 = vrot.slane %v1100, 6
    %v1106 = vadd.f32 %v121, %v1104
    %v1107 = vxor.u32 %v1106, 2147483648
    %v1108 = vmul.f32 %v1107, 1.442695
    %v1109 = vpow.pop %v1108
    %v1110 = vadd.f32 %v1109, 1.0
    %v1111 = vrcp.pop %v1110
    %v1112 = vmul.f32 1.0, %v1111
    %v1113 = vtanh.pop %v1106
    %v1115 = vrot.slane %v945, 6
    %v1117 = vmul.f32 %v1112, %v1115
    %1119 = vrot.lane.b32.xlu0 %v1113, 64
    %v1120 = vpop.permute.xlu0 %1119
    %v1122 = vmul.f32 %v1112, %v1120
    %1124 = vrot.lane.b32.xlu0 %v1122, 32
    %v1125 = vpop.permute.xlu0 %1124
    %v1127 = vadd.f32 %v1117, %v1125
    %v1128 = vtanh.pop %v1127
    %1130 = vrot.lane.b32.xlu0 %v1128, 64
    %v1131 = vpop.permute.xlu0 %1130
    %v1133 = vmul.f32 %v1112, %v1131
    %s1134 = scalar_lea.vmem %s4, 160
    %v1135 = vld [vmem:[%s1134] sm:$0xff]
    %v1136 = vld [vmem:[%s1134 + $0x8] sm:$0xff]
    %v1137 = vld [vmem:[%s1134 + $0x10] sm:$0xff]
    %v1138 = vld [vmem:[%s1134 + $0x18] sm:$0xff]
    %v1140 = vrot.slane %v1133, 2
    %1141 = vrot.lane.b32.xlu0 %v1140, 32
    %v1142 = vpop.permute.xlu0 %1141
    %v1143 = vsel %vm128, %v1142, 0
    %1145 = vmatprep.subr.mxu0 0.0
    %1146 = vmatpush1.msra.mxu0 %v1135
    %1147 = vmatprep.subr.mxu0 0.0
    %1148 = vmatpush1.msra.mxu0 %v1136
    %1149 = vmatprep.subr.mxu0 0.0
    %1150 = vmatpush1.msra.mxu0 %v1137
    %1151 = vmatprep.subr.mxu0 0.0
    %1152 = vmatpush1.msra.mxu0 %v1138
    %1153 = vmatprep.subr.mxu0 0.0
    %1154 = vmatpush1.msra.mxu0 0.0
    %1155 = vmatprep.subr.mxu0 0.0
    %1156 = vmatpush1.msra.mxu0 0.0
    %1157 = vmatprep.subr.mxu0 0.0
    %1158 = vmatpush1.msra.mxu0 0.0
    %1159 = vmatprep.subr.mxu0 0.0
    %1160 = vmatpush1.msra.mxu0 0.0
    %1161 = vmatprep.subr.mxu0 0.0
    %1162 = vmatpush1.msra.mxu0 0.0
    %1163 = vmatprep.subr.mxu0 0.0
    %1164 = vmatpush1.msra.mxu0 0.0
    %1165 = vmatprep.subr.mxu0 0.0
    %1166 = vmatpush1.msra.mxu0 0.0
    %1167 = vmatprep.subr.mxu0 0.0
    %1168 = vmatpush1.msra.mxu0 0.0
    %1169 = vmatprep.subr.mxu0 0.0
    %1170 = vmatpush1.msra.mxu0 0.0
    %1171 = vmatprep.subr.mxu0 0.0
    %1172 = vmatpush1.msra.mxu0 0.0
    %1173 = vmatprep.subr.mxu0 0.0
    %1174 = vmatpush1.msra.mxu0 0.0
    %1175 = vmatprep.subr.mxu0 0.0
    %1176 = vmatpush1.msra.mxu0 0.0
    %1177 = vmatprep.subr.mxu0 0.0
    %1178 = vmatpush1.msra.mxu0 0.0
    %1179 = vmatprep.subr.mxu0 0.0
    %1180 = vmatpush1.msra.mxu0 0.0
    %1181 = vmatprep.subr.mxu0 0.0
    %1182 = vmatpush1.msra.mxu0 0.0
    %1183 = vmatprep.subr.mxu0 0.0
    %1184 = vmatpush1.msra.mxu0 0.0
    %1185 = vmatprep.subr.mxu0 0.0
    %1186 = vmatpush1.msra.mxu0 0.0
    %1187 = vmatprep.subr.mxu0 0.0
    %1188 = vmatpush1.msra.mxu0 0.0
    %1189 = vmatprep.subr.mxu0 0.0
    %1190 = vmatpush1.msra.mxu0 0.0
    %1191 = vmatprep.subr.mxu0 0.0
    %1192 = vmatpush1.msra.mxu0 0.0
    %1193 = vmatprep.subr.mxu0 0.0
    %1194 = vmatpush1.msra.mxu0 0.0
    %1195 = vmatprep.subr.mxu0 0.0
    %1196 = vmatpush1.msra.mxu0 0.0
    %1197 = vmatprep.subr.mxu0 0.0
    %1198 = vmatpush1.msra.mxu0 0.0
    %1199 = vmatprep.subr.mxu0 0.0
    %1200 = vmatpush1.msra.mxu0 0.0
    %1201 = vmatprep.subr.mxu0 0.0
    %1202 = vmatpush1.msra.mxu0 0.0
    %1203 = vmatprep.subr.mxu0 0.0
    %1204 = vmatpush1.msra.mxu0 0.0
    %1205 = vmatprep.subr.mxu0 0.0
    %1206 = vmatpush1.msra.mxu0 0.0
    %1207 = vmatprep.subr.mxu0 0.0
    %1208 = vmatpush1.msra.mxu0 0.0
    %1209 = vmatprep.mubr.f32.mxu0 0.0
    %1210 = vmatmul.mubr.f32.gmra.mrb[0].mxu0 %v1143
    %v1211 = vpop.f32.mrb[0].mxu0
    %v1212 = vadd.f32 0.0, %v1211
    %v1213 = vpop.f32.mrb[0].mxu0
    %1214 = vdwg.mxu0
    %v1215 = vadd.f32 %v1032, %v1212
    %1216 = vmatprep.subr.mxu0 0.0
    %1217 = vmatpush1.msra.mxu0 %v124
    %1218 = vmatprep.subr.mxu0 0.0
    %1219 = vmatpush1.msra.mxu0 %v125
    %1220 = vmatprep.subr.mxu0 0.0
    %1221 = vmatpush1.msra.mxu0 %v126
    %1222 = vmatprep.subr.mxu0 0.0
    %1223 = vmatpush1.msra.mxu0 %v127
    %1224 = vmatprep.subr.mxu0 0.0
    %1225 = vmatpush1.msra.mxu0 0.0
    %1226 = vmatprep.subr.mxu0 0.0
    %1227 = vmatpush1.msra.mxu0 0.0
    %1228 = vmatprep.subr.mxu0 0.0
    %1229 = vmatpush1.msra.mxu0 0.0
    %1230 = vmatprep.subr.mxu0 0.0
    %1231 = vmatpush1.msra.mxu0 0.0
    %1232 = vmatprep.subr.mxu0 0.0
    %1233 = vmatpush1.msra.mxu0 0.0
    %1234 = vmatprep.subr.mxu0 0.0
    %1235 = vmatpush1.msra.mxu0 0.0
    %1236 = vmatprep.subr.mxu0 0.0
    %1237 = vmatpush1.msra.mxu0 0.0
    %1238 = vmatprep.subr.mxu0 0.0
    %1239 = vmatpush1.msra.mxu0 0.0
    %1240 = vmatprep.subr.mxu0 0.0
    %1241 = vmatpush1.msra.mxu0 0.0
    %1242 = vmatprep.subr.mxu0 0.0
    %1243 = vmatpush1.msra.mxu0 0.0
    %1244 = vmatprep.subr.mxu0 0.0
    %1245 = vmatpush1.msra.mxu0 0.0
    %1246 = vmatprep.subr.mxu0 0.0
    %1247 = vmatpush1.msra.mxu0 0.0
    %1248 = vmatprep.subr.mxu0 0.0
    %1249 = vmatpush1.msra.mxu0 0.0
    %1250 = vmatprep.subr.mxu0 0.0
    %1251 = vmatpush1.msra.mxu0 0.0
    %1252 = vmatprep.subr.mxu0 0.0
    %1253 = vmatpush1.msra.mxu0 0.0
    %1254 = vmatprep.subr.mxu0 0.0
    %1255 = vmatpush1.msra.mxu0 0.0
    %1256 = vmatprep.subr.mxu0 0.0
    %1257 = vmatpush1.msra.mxu0 0.0
    %1258 = vmatprep.subr.mxu0 0.0
    %1259 = vmatpush1.msra.mxu0 0.0
    %1260 = vmatprep.subr.mxu0 0.0
    %1261 = vmatpush1.msra.mxu0 0.0
    %1262 = vmatprep.subr.mxu0 0.0
    %1263 = vmatpush1.msra.mxu0 0.0
    %1264 = vmatprep.subr.mxu0 0.0
    %1265 = vmatpush1.msra.mxu0 0.0
    %1266 = vmatprep.subr.mxu0 0.0
    %1267 = vmatpush1.msra.mxu0 0.0
    %1268 = vmatprep.subr.mxu0 0.0
    %1269 = vmatpush1.msra.mxu0 0.0
    %1270 = vmatprep.subr.mxu0 0.0
    %1271 = vmatpush1.msra.mxu0 0.0
    %1272 = vmatprep.subr.mxu0 0.0
    %1273 = vmatpush1.msra.mxu0 0.0
    %1274 = vmatprep.subr.mxu0 0.0
    %1275 = vmatpush1.msra.mxu0 0.0
    %1276 = vmatprep.subr.mxu0 0.0
    %1277 = vmatpush1.msra.mxu0 0.0
    %1278 = vmatprep.subr.mxu0 0.0
    %1279 = vmatpush1.msra.mxu0 0.0
    %1280 = vmatprep.mubr.f32.mxu0 0.0
    %1281 = vmatmul.mubr.f32.gmra.mrb[0].mxu0 %v1143
    %v1282 = vpop.f32.mrb[0].mxu0
    %v1283 = vadd.f32 0.0, %v1282
    %v1284 = vpop.f32.mrb[0].mxu0
    %1285 = vdwg.mxu0
    %v1287 = vrot.slane %v1283, 4
    %v1289 = vadd.f32 %v121, %v1287
    %v1290 = vxor.u32 %v1289, 2147483648
    %v1291 = vmul.f32 %v1290, 1.442695
    %v1292 = vpow.pop %v1291
    %v1293 = vadd.f32 %v1292, 1.0
    %v1294 = vrcp.pop %v1293
    %v1295 = vmul.f32 1.0, %v1294
    %v1296 = vtanh.pop %v1289
    %v1298 = vrot.slane %v1127, 6
    %v1300 = vmul.f32 %v1295, %v1298
    %1302 = vrot.lane.b32.xlu0 %v1296, 64
    %v1303 = vpop.permute.xlu0 %1302
    %v1305 = vmul.f32 %v1295, %v1303
    %1307 = vrot.lane.b32.xlu0 %v1305, 32
    %v1308 = vpop.permute.xlu0 %1307
    %v1310 = vadd.f32 %v1300, %v1308
    %v1311 = vtanh.pop %v1310
    %1313 = vrot.lane.b32.xlu0 %v1311, 64
    %v1314 = vpop.permute.xlu0 %1313
    %v1316 = vmul.f32 %v1295, %v1314
    %s1317 = scalar_lea.vmem %s4, 192
    %v1318 = vld [vmem:[%s1317] sm:$0xff]
    %v1319 = vld [vmem:[%s1317 + $0x8] sm:$0xff]
    %v1320 = vld [vmem:[%s1317 + $0x10] sm:$0xff]
    %v1321 = vld [vmem:[%s1317 + $0x18] sm:$0xff]
    %v1323 = vrot.slane %v1316, 4
    %1324 = vrot.lane.b32.xlu0 %v1323, 32
    %v1325 = vpop.permute.xlu0 %1324
    %v1326 = vsel %vm128, %v1325, 0
    %1328 = vmatprep.subr.mxu0 0.0
    %1329 = vmatpush1.msra.mxu0 %v1318
    %1330 = vmatprep.subr.mxu0 0.0
    %1331 = vmatpush1.msra.mxu0 %v1319
    %1332 = vmatprep.subr.mxu0 0.0
    %1333 = vmatpush1.msra.mxu0 %v1320
    %1334 = vmatprep.subr.mxu0 0.0
    %1335 = vmatpush1.msra.mxu0 %v1321
    %1336 = vmatprep.subr.mxu0 0.0
    %1337 = vmatpush1.msra.mxu0 0.0
    %1338 = vmatprep.subr.mxu0 0.0
    %1339 = vmatpush1.msra.mxu0 0.0
    %1340 = vmatprep.subr.mxu0 0.0
    %1341 = vmatpush1.msra.mxu0 0.0
    %1342 = vmatprep.subr.mxu0 0.0
    %1343 = vmatpush1.msra.mxu0 0.0
    %1344 = vmatprep.subr.mxu0 0.0
    %1345 = vmatpush1.msra.mxu0 0.0
    %1346 = vmatprep.subr.mxu0 0.0
    %1347 = vmatpush1.msra.mxu0 0.0
    %1348 = vmatprep.subr.mxu0 0.0
    %1349 = vmatpush1.msra.mxu0 0.0
    %1350 = vmatprep.subr.mxu0 0.0
    %1351 = vmatpush1.msra.mxu0 0.0
    %1352 = vmatprep.subr.mxu0 0.0
    %1353 = vmatpush1.msra.mxu0 0.0
    %1354 = vmatprep.subr.mxu0 0.0
    %1355 = vmatpush1.msra.mxu0 0.0
    %1356 = vmatprep.subr.mxu0 0.0
    %1357 = vmatpush1.msra.mxu0 0.0
    %1358 = vmatprep.subr.mxu0 0.0
    %1359 = vmatpush1.msra.mxu0 0.0
    %1360 = vmatprep.subr.mxu0 0.0
    %1361 = vmatpush1.msra.mxu0 0.0
    %1362 = vmatprep.subr.mxu0 0.0
    %1363 = vmatpush1.msra.mxu0 0.0
    %1364 = vmatprep.subr.mxu0 0.0
    %1365 = vmatpush1.msra.mxu0 0.0
    %1366 = vmatprep.subr.mxu0 0.0
    %1367 = vmatpush1.msra.mxu0 0.0
    %1368 = vmatprep.subr.mxu0 0.0
    %1369 = vmatpush1.msra.mxu0 0.0
    %1370 = vmatprep.subr.mxu0 0.0
    %1371 = vmatpush1.msra.mxu0 0.0
    %1372 = vmatprep.subr.mxu0 0.0
    %1373 = vmatpush1.msra.mxu0 0.0
    %1374 = vmatprep.subr.mxu0 0.0
    %1375 = vmatpush1.msra.mxu0 0.0
    %1376 = vmatprep.subr.mxu0 0.0
    %1377 = vmatpush1.msra.mxu0 0.0
    %1378 = vmatprep.subr.mxu0 0.0
    %1379 = vmatpush1.msra.mxu0 0.0
    %1380 = vmatprep.subr.mxu0 0.0
    %1381 = vmatpush1.msra.mxu0 0.0
    %1382 = vmatprep.subr.mxu0 0.0
    %1383 = vmatpush1.msra.mxu0 0.0
    %1384 = vmatprep.subr.mxu0 0.0
    %1385 = vmatpush1.msra.mxu0 0.0
    %1386 = vmatprep.subr.mxu0 0.0
    %1387 = vmatpush1.msra.mxu0 0.0
    %1388 = vmatprep.subr.mxu0 0.0
    %1389 = vmatpush1.msra.mxu0 0.0
    %1390 = vmatprep.subr.mxu0 0.0
    %1391 = vmatpush1.msra.mxu0 0.0
    %1392 = vmatprep.mubr.f32.mxu0 0.0
    %1393 = vmatmul.mubr.f32.gmra.mrb[0].mxu0 %v1326
    %v1394 = vpop.f32.mrb[0].mxu0
    %v1395 = vadd.f32 0.0, %v1394
    %v1396 = vpop.f32.mrb[0].mxu0
    %1397 = vdwg.mxu0
    %v1398 = vadd.f32 %v1215, %v1395
    %1399 = vmatprep.subr.mxu0 0.0
    %1400 = vmatpush1.msra.mxu0 %v124
    %1401 = vmatprep.subr.mxu0 0.0
    %1402 = vmatpush1.msra.mxu0 %v125
    %1403 = vmatprep.subr.mxu0 0.0
    %1404 = vmatpush1.msra.mxu0 %v126
    %1405 = vmatprep.subr.mxu0 0.0
    %1406 = vmatpush1.msra.mxu0 %v127
    %1407 = vmatprep.subr.mxu0 0.0
    %1408 = vmatpush1.msra.mxu0 0.0
    %1409 = vmatprep.subr.mxu0 0.0
    %1410 = vmatpush1.msra.mxu0 0.0
    %1411 = vmatprep.subr.mxu0 0.0
    %1412 = vmatpush1.msra.mxu0 0.0
    %1413 = vmatprep.subr.mxu0 0.0
    %1414 = vmatpush1.msra.mxu0 0.0
    %1415 = vmatprep.subr.mxu0 0.0
    %1416 = vmatpush1.msra.mxu0 0.0
    %1417 = vmatprep.subr.mxu0 0.0
    %1418 = vmatpush1.msra.mxu0 0.0
    %1419 = vmatprep.subr.mxu0 0.0
    %1420 = vmatpush1.msra.mxu0 0.0
    %1421 = vmatprep.subr.mxu0 0.0
    %1422 = vmatpush1.msra.mxu0 0.0
    %1423 = vmatprep.subr.mxu0 0.0
    %1424 = vmatpush1.msra.mxu0 0.0
    %1425 = vmatprep.subr.mxu0 0.0
    %1426 = vmatpush1.msra.mxu0 0.0
    %1427 = vmatprep.subr.mxu0 0.0
    %1428 = vmatpush1.msra.mxu0 0.0
    %1429 = vmatprep.subr.mxu0 0.0
    %1430 = vmatpush1.msra.mxu0 0.0
    %1431 = vmatprep.subr.mxu0 0.0
    %1432 = vmatpush1.msra.mxu0 0.0
    %1433 = vmatprep.subr.mxu0 0.0
    %1434 = vmatpush1.msra.mxu0 0.0
    %1435 = vmatprep.subr.mxu0 0.0
    %1436 = vmatpush1.msra.mxu0 0.0
    %1437 = vmatprep.subr.mxu0 0.0
    %1438 = vmatpush1.msra.mxu0 0.0
    %1439 = vmatprep.subr.mxu0 0.0
    %1440 = vmatpush1.msra.mxu0 0.0
    %1441 = vmatprep.subr.mxu0 0.0
    %1442 = vmatpush1.msra.mxu0 0.0
    %1443 = vmatprep.subr.mxu0 0.0
    %1444 = vmatpush1.msra.mxu0 0.0
    %1445 = vmatprep.subr.mxu0 0.0
    %1446 = vmatpush1.msra.mxu0 0.0
    %1447 = vmatprep.subr.mxu0 0.0
    %1448 = vmatpush1.msra.mxu0 0.0
    %1449 = vmatprep.subr.mxu0 0.0
    %1450 = vmatpush1.msra.mxu0 0.0
    %1451 = vmatprep.subr.mxu0 0.0
    %1452 = vmatpush1.msra.mxu0 0.0
    %1453 = vmatprep.subr.mxu0 0.0
    %1454 = vmatpush1.msra.mxu0 0.0
    %1455 = vmatprep.subr.mxu0 0.0
    %1456 = vmatpush1.msra.mxu0 0.0
    %1457 = vmatprep.subr.mxu0 0.0
    %1458 = vmatpush1.msra.mxu0 0.0
    %1459 = vmatprep.subr.mxu0 0.0
    %1460 = vmatpush1.msra.mxu0 0.0
    %1461 = vmatprep.subr.mxu0 0.0
    %1462 = vmatpush1.msra.mxu0 0.0
    %1463 = vmatprep.mubr.f32.mxu0 0.0
    %1464 = vmatmul.mubr.f32.gmra.mrb[0].mxu0 %v1326
    %v1465 = vpop.f32.mrb[0].mxu0
    %v1466 = vadd.f32 0.0, %v1465
    %v1467 = vpop.f32.mrb[0].mxu0
    %1468 = vdwg.mxu0
    %v1470 = vrot.slane %v1466, 2
    %v1472 = vadd.f32 %v121, %v1470
    %v1473 = vxor.u32 %v1472, 2147483648
    %v1474 = vmul.f32 %v1473, 1.442695
    %v1475 = vpow.pop %v1474
    %v1476 = vadd.f32 %v1475, 1.0
    %v1477 = vrcp.pop %v1476
    %v1478 = vmul.f32 1.0, %v1477
    %v1479 = vtanh.pop %v1472
    %v1481 = vrot.slane %v1310, 6
    %v1483 = vmul.f32 %v1478, %v1481
    %1485 = vrot.lane.b32.xlu0 %v1479, 64
    %v1486 = vpop.permute.xlu0 %1485
    %v1488 = vmul.f32 %v1478, %v1486
    %1490 = vrot.lane.b32.xlu0 %v1488, 32
    %v1491 = vpop.permute.xlu0 %1490
    %v1493 = vadd.f32 %v1483, %v1491
    %v1494 = vtanh.pop %v1493
    %1496 = vrot.lane.b32.xlu0 %v1494, 64
    %v1497 = vpop.permute.xlu0 %1496
    %v1499 = vmul.f32 %v1478, %v1497
    %s1500 = scalar_lea.vmem %s4, 224
    %v1501 = vld [vmem:[%s1500] sm:$0xff]
    %v1502 = vld [vmem:[%s1500 + $0x8] sm:$0xff]
    %v1503 = vld [vmem:[%s1500 + $0x10] sm:$0xff]
    %v1504 = vld [vmem:[%s1500 + $0x18] sm:$0xff]
    %v1506 = vrot.slane %v1499, 6
    %1507 = vrot.lane.b32.xlu0 %v1506, 32
    %v1508 = vpop.permute.xlu0 %1507
    %v1509 = vsel %vm128, %v1508, 0
    %1511 = vmatprep.subr.mxu0 0.0
    %1512 = vmatpush1.msra.mxu0 %v1501
    %1513 = vmatprep.subr.mxu0 0.0
    %1514 = vmatpush1.msra.mxu0 %v1502
    %1515 = vmatprep.subr.mxu0 0.0
    %1516 = vmatpush1.msra.mxu0 %v1503
    %1517 = vmatprep.subr.mxu0 0.0
    %1518 = vmatpush1.msra.mxu0 %v1504
    %1519 = vmatprep.subr.mxu0 0.0
    %1520 = vmatpush1.msra.mxu0 0.0
    %1521 = vmatprep.subr.mxu0 0.0
    %1522 = vmatpush1.msra.mxu0 0.0
    %1523 = vmatprep.subr.mxu0 0.0
    %1524 = vmatpush1.msra.mxu0 0.0
    %1525 = vmatprep.subr.mxu0 0.0
    %1526 = vmatpush1.msra.mxu0 0.0
    %1527 = vmatprep.subr.mxu0 0.0
    %1528 = vmatpush1.msra.mxu0 0.0
    %1529 = vmatprep.subr.mxu0 0.0
    %1530 = vmatpush1.msra.mxu0 0.0
    %1531 = vmatprep.subr.mxu0 0.0
    %1532 = vmatpush1.msra.mxu0 0.0
    %1533 = vmatprep.subr.mxu0 0.0
    %1534 = vmatpush1.msra.mxu0 0.0
    %1535 = vmatprep.subr.mxu0 0.0
    %1536 = vmatpush1.msra.mxu0 0.0
    %1537 = vmatprep.subr.mxu0 0.0
    %1538 = vmatpush1.msra.mxu0 0.0
    %1539 = vmatprep.subr.mxu0 0.0
    %1540 = vmatpush1.msra.mxu0 0.0
    %1541 = vmatprep.subr.mxu0 0.0
    %1542 = vmatpush1.msra.mxu0 0.0
    %1543 = vmatprep.subr.mxu0 0.0
    %1544 = vmatpush1.msra.mxu0 0.0
    %1545 = vmatprep.subr.mxu0 0.0
    %1546 = vmatpush1.msra.mxu0 0.0
    %1547 = vmatprep.subr.mxu0 0.0
    %1548 = vmatpush1.msra.mxu0 0.0
    %1549 = vmatprep.subr.mxu0 0.0
    %1550 = vmatpush1.msra.mxu0 0.0
    %1551 = vmatprep.subr.mxu0 0.0
    %1552 = vmatpush1.msra.mxu0 0.0
    %1553 = vmatprep.subr.mxu0 0.0
    %1554 = vmatpush1.msra.mxu0 0.0
    %1555 = vmatprep.subr.mxu0 0.0
    %1556 = vmatpush1.msra.mxu0 0.0
    %1557 = vmatprep.subr.mxu0 0.0
    %1558 = vmatpush1.msra.mxu0 0.0
    %1559 = vmatprep.subr.mxu0 0.0
    %1560 = vmatpush1.msra.mxu0 0.0
    %1561 = vmatprep.subr.mxu0 0.0
    %1562 = vmatpush1.msra.mxu0 0.0
    %1563 = vmatprep.subr.mxu0 0.0
    %1564 = vmatpush1.msra.mxu0 0.0
    %1565 = vmatprep.subr.mxu0 0.0
    %1566 = vmatpush1.msra.mxu0 0.0
    %1567 = vmatprep.subr.mxu0 0.0
    %1568 = vmatpush1.msra.mxu0 0.0
    %1569 = vmatprep.subr.mxu0 0.0
    %1570 = vmatpush1.msra.mxu0 0.0
    %1571 = vmatprep.subr.mxu0 0.0
    %1572 = vmatpush1.msra.mxu0 0.0
    %1573 = vmatprep.subr.mxu0 0.0
    %1574 = vmatpush1.msra.mxu0 0.0
    %1575 = vmatprep.mubr.f32.mxu0 0.0
    %1576 = vmatmul.mubr.f32.gmra.mrb[0].mxu0 %v1509
    %v1577 = vpop.f32.mrb[0].mxu0
    %v1578 = vadd.f32 0.0, %v1577
    %v1579 = vpop.f32.mrb[0].mxu0
    %1580 = vdwg.mxu0
    %v1581 = vadd.f32 %v1398, %v1578
    %v1582 = vld [vmem:[%s5] sm:$0x1]
    %v1584 = vlaneseq
    %v1585 = vshrl.u32 %v1584, 7
    %v1586 = vsub.s32 0, %v1585
    %v1587 = vrot.slane %v1582, %v1586
    %v1589 = vadd.f32 %v1581, %v1587
    %vm1590 = vcmask 123904
    %1591 = vst.msk [vmem:[%s6] sm:$0x3] %vm1590, %v1589
    %1592 = vrot.lane.b32.xlu0 %v1499, 32
    %v1593 = vpop.permute.xlu0 %1592
    %vm1595 = vcmask 261126
    %1596 = vst.msk [vmem:[#allocation2 - $0x6] sm:$0xc0] %vm1595, %v1593
    %1598 = vrot.lane.b32.xlu0 %v1493, 96
    %v1599 = vpop.permute.xlu0 %1598
    %1601 = vst.msk [vmem:[#allocation4 - $0x6] sm:$0xc0] %vm1595, %v1599
    // Predicated region
    $region26: #{lstm_base_net_forward.1} parent=1 // pred_check
      _
    $region27: #{lstm_base_net_forward.1} parent=1 // pred_check_branch
      %1603 = sbr.rel (0) target = $region29
    $region28: #{lstm_base_net_forward.1} parent=1 // pred_region
      _
    $region29: #{lstm_base_net_forward.1} parent=1 // pred_fallthru
      _
    // Predicated region
    $region30: #{lstm_base_net_forward.1} parent=1 // pred_check
      _
    $region31: #{lstm_base_net_forward.1} parent=1 // pred_check_branch
      %1605 = sbr.rel (0) target = $region33
    $region32: #{lstm_base_net_forward.1} parent=1 // pred_region
      %s1607 = ssub.s32 32, 32
      %1608 = vsyncadd [#allocation3], %s1607
      %s1610 = sshll.u32 [#allocation2], 4
      %s1611 = int_to_ptr.vmem [resolvable:$true] %s1610
      %1613 = dma.vmem_to_hbm [thread:$0]  %s1611, 32, %s7, [#allocation3]
    $region33: #{lstm_base_net_forward.1} parent=1 // pred_fallthru
      _
    // Predicated region
    $region34: #{lstm_base_net_forward.1} parent=1 // pred_check
      _
    $region35: #{lstm_base_net_forward.1} parent=1 // pred_check_branch
      %1615 = sbr.rel (0) target = $region37
    $region36: #{lstm_base_net_forward.1} parent=1 // pred_region
      %s1617 = ssub.s32 32, 32
      %1618 = vsyncadd [#allocation5], %s1617
      %s1620 = sshll.u32 [#allocation4], 4
      %s1621 = int_to_ptr.vmem [resolvable:$true] %s1620
      %1623 = dma.vmem_to_hbm [thread:$0]  %s1621, 32, %s8, [#allocation5]
    $region37: #{lstm_base_net_forward.1} parent=1 // pred_fallthru
      _
    // Predicated region
    $region38: #{lstm_base_net_forward.1} parent=1 // pred_check
      _
    $region39: #{lstm_base_net_forward.1} parent=1 // pred_check_branch
      %1625 = sbr.rel (0) target = $region41
    $region40: #{lstm_base_net_forward.1} parent=1 // pred_region
      _
    $region41: #{lstm_base_net_forward.1} parent=1 // pred_fallthru
      _
    // Predicated region
    $region42: #{lstm_base_net_forward.1} parent=1 // pred_check
      _
    $region43: #{lstm_base_net_forward.1} parent=1 // pred_check_branch
      %1627 = sbr.rel (0) target = $region45
    $region44: #{lstm_base_net_forward.1} parent=1 // pred_region
      %1628 = dma.done [#allocation3], 32
    $region45: #{lstm_base_net_forward.1} parent=1 // pred_fallthru
      _
    // Predicated region
    $region46: #{lstm_base_net_forward.1} parent=1 // pred_check
      _
    $region47: #{lstm_base_net_forward.1} parent=1 // pred_check_branch
      %1630 = sbr.rel (0) target = $region49
    $region48: #{lstm_base_net_forward.1} parent=1 // pred_region
      %1631 = dma.done [#allocation5], 32
    $region49: #{lstm_base_net_forward.1} parent=1 // pred_fallthru
      _
    %1632 = vsyncpa [#allocation3], 1
    %1633 = vsyncpa [#allocation5], 1

</llo_original>
